<compile_context>
chip_gen: v5e
topology: v5e:2x2
jax: 0.10.0
libtpu: 0.0.40
codegen_flags: <defaults>
</compile_context>

<pallas_src>
import functools

import jax
import jax.numpy as jnp
from jax import lax
from jax.experimental import pallas as pl
from jax.experimental.pallas import tpu as pltpu


def _round_up(x, m):
    return (x + m - 1) // m * m


def _vmem_budget_bytes():
    """~75% of physical VMEM: ~96 MiB on v5e/v6e, ~48 MiB on v7x."""
    try:
        cap = int(pltpu.get_tpu_info().vmem_capacity_bytes)
    except Exception:
        cap = 64 * 1024 * 1024
    return max(32 * 1024 * 1024, (cap * 3) // 4)


def _pick_chunk(T, Bp, Hp, in_bytes, out_bytes, budget, max_chunk=64):
    """Timesteps per grid step.  No divisor constraint on T (tail is masked).
    Sized so the double-buffered xg/out chunk pipeline fits the VMEM budget."""
    fixed = 2 * Hp * (3 * Hp) * in_bytes + 6 * Bp * Hp * 4      # whh + h0/hT/bhn
    per_step = 2 * Bp * (3 * Hp * in_bytes + Hp * out_bytes)    # xg + out, 2 bufs
    c = max(1, min(T, max_chunk))
    while c > 1 and fixed + c * per_step > budget:
        c = (c + 1) // 2
    return c


# ----------------------------------------------------------------------------- #
# Pallas kernel: recurrent part of one GRU layer.
# grid = (n_bsplit, T_pad // C): leading "parallel" batch-half axis (v7x 2 TCs),
# trailing "arbitrary" (sequential) time-chunk axis.
#   xg_ref : (C, Bpb, 3*Hp)  precomputed x @ W_ih + b_ih (+ folded b_hh[r,z])
#   whh_ref: (Hp, 3*Hp)      fused hidden weights [r | z | n]
#   bhn_ref: (1, Hp)         b_hh[n] (must stay inside the r*(.) term)
#   h0_ref : (Bpb, Hp)       initial hidden state (this batch half)
#   out_ref: (C, Bpb, Hp)    per-step hidden states for this chunk
#   hT_ref : (Bpb, Hp)       carried / final hidden state (resident output block)
# ----------------------------------------------------------------------------- #
def _gru_recurrent_kernel(xg_ref, whh_ref, bhn_ref, h0_ref, out_ref, hT_ref,
                          *, seq_len, unroll):
    C, Bpb, Hp = out_ref.shape

    # Load the initial hidden state into the resident hT block at chunk 0
    # (re-done per batch half, i.e. whenever program_id(1) wraps to 0).
    @pl.when(pl.program_id(1) == 0)
    def _():
        hT_ref[...] = h0_ref[...]

    # Hoist weight load and bias broadcast out of the unrolled loop.
    whh = whh_ref[...]                                               # (Hp, 3Hp)
    bhn = jnp.broadcast_to(bhn_ref[...].astype(jnp.float32), (Bpb, Hp))
    t0 = pl.program_id(1) * C

    def fast_sigmoid(x):
        # sigmoid(x) == 0.5*tanh(0.5*x) + 0.5 : one EUP op (vs exp + recip).
        return 0.5 * jnp.tanh(0.5 * x) + 0.5

    def step(i, h_prev):
        xg = xg_ref[i].astype(jnp.float32)                           # (Bpb, 3Hp)
        hg = jnp.dot(h_prev.astype(whh.dtype), whh,
                     preferred_element_type=jnp.float32)             # one MXU matmul
        # PyTorch gate order [r, z, n]; b_hh[r], b_hh[z] already folded into xg.
        r = fast_sigmoid(xg[:, :Hp] + hg[:, :Hp])
        z = fast_sigmoid(xg[:, Hp:2 * Hp] + hg[:, Hp:2 * Hp])
        n = jnp.tanh(xg[:, 2 * Hp:] + r * (hg[:, 2 * Hp:] + bhn))
        h_new = (1.0 - z) * n + z * h_prev
        out_ref[i] = h_new.astype(out_ref.dtype)
        if seq_len % C != 0:
            # Tail guard: padded timesteps must not advance the carried state.
            h_new = jnp.where(t0 + i < seq_len, h_new, h_prev)
        return h_new

    h_last = lax.fori_loop(0, C, step, hT_ref[...], unroll=unroll)
    hT_ref[...] = h_last


def _gru_layer(xg, whh_f, bhn_f, h0_p, *, seq_len, chunk, n_bsplit,
               out_dtype, vmem_limit, unroll):
    """Recurrent part of one layer.  xg: (T_pad, Bp, 3Hp).  Returns (out, h_T)."""
    T_pad, Bp, threeHp = xg.shape
    Hp = threeHp // 3
    Bpb = Bp // n_bsplit
    n_chunks = T_pad // chunk

    kernel = functools.partial(_gru_recurrent_kernel,
                               seq_len=seq_len, unroll=unroll)

    grid_spec = pltpu.PrefetchScalarGridSpec(
        num_scalar_prefetch=0,
        grid=(n_bsplit, n_chunks),
        in_specs=[
            pl.BlockSpec((chunk, Bpb, threeHp), lambda p, c: (c, p, 0)),  # xg
            pl.BlockSpec((Hp, threeHp), lambda p, c: (0, 0)),             # W_hh
            pl.BlockSpec((1, Hp), lambda p, c: (0, 0)),                   # b_hh[n]
            pl.BlockSpec((Bpb, Hp), lambda p, c: (p, 0)),                 # h0
        ],
        out_specs=[
            pl.BlockSpec((chunk, Bpb, Hp), lambda p, c: (c, p, 0)),       # out
            pl.BlockSpec((Bpb, Hp), lambda p, c: (p, 0)),                 # final h
        ],
    )

    out, h_T = pl.pallas_call(
        kernel,
        out_shape=(
            jax.ShapeDtypeStruct((T_pad, Bp, Hp), out_dtype),
            jax.ShapeDtypeStruct((Bp, Hp), jnp.float32),
        ),
        grid_spec=grid_spec,
        compiler_params=pltpu.CompilerParams(
            dimension_semantics=("parallel", "arbitrary"),
            vmem_limit_bytes=int(vmem_limit)),
    )(xg, whh_f, bhn_f, h0_p)
    return out, h_T


def _pack_layer(w_ih, w_hh, b_ih, b_hh, d_in_pad, Hp, dtype):
    """Fuse gate axis into the lane dim and pad H -> Hp (128-aligned).

    Gate g of the fused (., 3*Hp) arrays lives in lanes [g*Hp : g*Hp + H].
    """
    def pad2(a, rows, cols):
        return jnp.pad(a, ((0, rows - a.shape[0]), (0, cols - a.shape[1])))

    def pad1(v, n):
        return jnp.pad(v, (0, n - v.shape[0]))

    wih_f = jnp.concatenate([pad2(w_ih[g], d_in_pad, Hp) for g in range(3)],
                            axis=1).astype(dtype)                    # (d_in_pad, 3Hp)
    whh_f = jnp.concatenate([pad2(w_hh[g], Hp, Hp) for g in range(3)],
                            axis=1).astype(dtype)                    # (Hp, 3Hp)
    # Fold b_hh[r], b_hh[z] into the x-path bias; keep b_hh[n] separate.
    bx_f = jnp.concatenate(
        [pad1(b_ih[g] + (b_hh[g] if g < 2 else 0.0), Hp) for g in range(3)]
    ).astype(jnp.float32)                                            # (3Hp,)
    bhn_f = pad1(b_hh[2], Hp)[None, :].astype(jnp.float32)           # (1, Hp)
    return wih_f, whh_f, bx_f, bhn_f


@functools.partial(jax.jit, static_argnames=("compute_dtype",))
def cor_gru_forward(x, h, params, compute_dtype=jnp.bfloat16):
    """CorGRU.forward(x, h) -> (out, h_n).

    x: (batch, seq, input_dim)   h: (n_layers, batch, hidden)
    params: list of (w_ih[3,Din,H], w_hh[3,H,H], b_ih[3,H], b_hh[3,H]) per layer.
    """
    B, T, _ = x.shape
    H = h.shape[-1]
    Bp = _round_up(B, 8)        # sublane multiple
    Hp = _round_up(H, 128)      # lane multiple
    num_layers = len(params)

    # v7x: split the padded batch across the 2 TensorCores when it divides cleanly.
    n_bsplit = 2 if (Bp >= 16 and Bp % 16 == 0) else 1

    in_bytes = jnp.dtype(compute_dtype).itemsize
    vmem_limit = _vmem_budget_bytes()
    chunk = _pick_chunk(T, Bp, Hp, in_bytes, 4, vmem_limit)
    n_chunks = (T + chunk - 1) // chunk
    T_pad = n_chunks * chunk
    # Full unroll only for small tiles; partial unroll avoids vreg spills.
    unroll = True if (Bp < 64 and Hp < 512) else 2

    # Time-major, batch padded to Bp sublanes, time padded to T_pad (tail masked
    # inside the kernel so padded steps never touch the carried hidden state).
    x_tbd = jnp.transpose(x, (1, 0, 2)).astype(jnp.float32)
    layer_in = jnp.pad(x_tbd, ((0, T_pad - T), (0, Bp - B), (0, 0)))

    h_finals = []
    for li, (w_ih, w_hh, b_ih, b_hh) in enumerate(params):
        d_in_pad = layer_in.shape[-1]
        wih_f, whh_f, bx_f, bhn_f = _pack_layer(
            w_ih, w_hh, b_ih, b_hh, d_in_pad, Hp, compute_dtype)

        # Hoisted input-path GEMM: one dense 2-D matmul with M = T_pad*Bp.
        # Bias add in f32, then cast the streamed xg buffer to compute_dtype.
        xg2d = jnp.dot(layer_in.reshape(T_pad * Bp, d_in_pad).astype(compute_dtype),
                       wih_f, preferred_element_type=jnp.float32)
        xg = (xg2d + bx_f).reshape(T_pad, Bp, 3 * Hp).astype(compute_dtype)
        # NOTE: padded batch rows of xg carry the folded bias (nonzero); they are
        # sliced away below and never feed valid rows.

        h0_p = jnp.zeros((Bp, Hp), jnp.float32).at[:B, :H].set(
            h[li].astype(jnp.float32))

        # Inner-layer activations stream in compute_dtype; final layer in f32.
        out_dtype = jnp.float32 if li == num_layers - 1 else compute_dtype
        layer_out, h_T = _gru_layer(
            xg, whh_f, bhn_f, h0_p,
            seq_len=T, chunk=chunk, n_bsplit=n_bsplit,
            out_dtype=out_dtype, vmem_limit=vmem_limit, unroll=unroll)
        h_finals.append(h_T[:B, :H])
        layer_in = layer_out            # stays padded (T_pad, Bp, Hp)

    out = jnp.transpose(layer_in[:T, :B, :H], (1, 0, 2))   # back to batch-first
    h_n = jnp.stack(h_finals, axis=0)
    return out, h_n


# ----------------------------------------------------------------------------- #
# Deterministic parameter init mimicking the module's __init__:
#   bias -> 0, weight_ih -> kaiming normal, weight_hh -> orthogonal.
# ----------------------------------------------------------------------------- #
def init_params(key, input_dim, hidden_dim, n_layers):
    params = []
    for layer in range(n_layers):
        d_in = input_dim if layer == 0 else hidden_dim
        key, k1, k2 = jax.random.split(key, 3)
        std = (2.0 / d_in) ** 0.5
        w_ih = jax.random.normal(k1, (3, hidden_dim, d_in), jnp.float32) * std
        w_ih = jnp.transpose(w_ih, (0, 2, 1))                 # (3, d_in, H)
        a = jax.random.normal(k2, (3 * hidden_dim, hidden_dim), jnp.float32)
        q, r = jnp.linalg.qr(a)
        q = q * jnp.sign(jnp.diagonal(r))[None, :]
        w_hh = jnp.transpose(q.reshape(3, hidden_dim, hidden_dim), (0, 2, 1))
        b_ih = jnp.zeros((3, hidden_dim), jnp.float32)
        b_hh = jnp.zeros((3, hidden_dim), jnp.float32)
        params.append((w_ih, w_hh, b_ih, b_hh))
    return params


# ----------------------------------------------------------------------------- #
# Pure-JAX reference (same math) for a sanity check.
# ----------------------------------------------------------------------------- #
def ref_gru(x, h, params):
    B, T, _ = x.shape
    layer_in = x
    h_finals = []
    for layer_idx, (w_ih, w_hh, b_ih, b_hh) in enumerate(params):
        hs = h[layer_idx]
        outs = []
        for t in range(T):
            xt = layer_in[:, t, :]
            xr = xt @ w_ih[0] + b_ih[0]; xz = xt @ w_ih[1] + b_ih[1]; xn = xt @ w_ih[2] + b_ih[2]
            hr = hs @ w_hh[0] + b_hh[0]; hz = hs @ w_hh[1] + b_hh[1]; hn = hs @ w_hh[2] + b_hh[2]
            r = jax.nn.sigmoid(xr + hr); z = jax.nn.sigmoid(xz + hz)
            n = jnp.tanh(xn + r * hn)
            hs = (1.0 - z) * n + z * hs
            outs.append(hs)
        layer_in = jnp.stack(outs, axis=1)
        h_finals.append(hs)
    return layer_in, jnp.stack(h_finals, axis=0)


if __name__ == "__main__":
    batch, seq, input_dim, hidden_dim, n_layers = 2, 8, 8, 32, 2

    key = jax.random.PRNGKey(0)
    k_x, k_h, k_p = jax.random.split(key, 3)
    x = jax.random.normal(k_x, (batch, seq, input_dim), jnp.float32)
    h0 = jax.random.normal(k_h, (n_layers, batch, hidden_dim), jnp.float32)
    params = init_params(k_p, input_dim, hidden_dim, n_layers)

    out_ref, h_ref = ref_gru(x, h0, params)

    # Tight numerical check: f32 compute path.
    out32, hn32 = cor_gru_forward(x, h0, params, compute_dtype=jnp.float32)
    out32 = jax.block_until_ready(out32)
    hn32 = jax.block_until_ready(hn32)
    assert out32.shape == (batch, seq, hidden_dim)
    assert hn32.shape == (n_layers, batch, hidden_dim)
    assert jnp.allclose(out32, out_ref, atol=1e-4, rtol=1e-4)
    assert jnp.allclose(hn32, h_ref, atol=1e-4, rtol=1e-4)

    # Default performance path: bf16 streams/weights, f32 gate math/accumulation.
    out_bf, hn_bf = cor_gru_forward(x, h0, params, compute_dtype=jnp.bfloat16)
    out_bf = jax.block_until_ready(out_bf)
    hn_bf = jax.block_until_ready(hn_bf)
    assert out_bf.shape == (batch, seq, hidden_dim)
    assert hn_bf.shape == (n_layers, batch, hidden_dim)
    assert bool(jnp.all(jnp.isfinite(out_bf))) and bool(jnp.all(jnp.isfinite(hn_bf)))
    assert float(jnp.max(jnp.abs(out_bf - out_ref))) < 0.25
    assert float(jnp.max(jnp.abs(hn_bf - h_ref))) < 0.25

    print("KERNEL_OK")
</pallas_src>

<mosaic_0001>
module attributes {stable_mosaic.version = 11 : i64} {
  func.func @_gru_recurrent_kernel(%arg0: i32, %arg1: i32, %arg2: memref<8x8x384xf32, #tpu.memory_space<vmem>>, %arg3: memref<128x384xf32, #tpu.memory_space<vmem>>, %arg4: memref<1x128xf32, #tpu.memory_space<vmem>>, %arg5: memref<8x128xf32, #tpu.memory_space<vmem>>, %arg6: memref<8x8x128xf32, #tpu.memory_space<vmem>>, %arg7: memref<8x128xf32, #tpu.memory_space<vmem>>) attributes {dimension_semantics = [#tpu.dimension_semantics<parallel>, #tpu.dimension_semantics<arbitrary>], iteration_bounds = array<i64: 1, 1>, scalar_prefetch = 0 : i64, scratch_operands = 0 : i64, tpu.core_type = #tpu.core_type<tc>, window_params = [{transform_indices = @transform_0, window_bounds = array<i64: 8, 8, 384>}, {pipeline_mode = #tpu.pipeline_mode<synchronous>, transform_indices = @transform_1, window_bounds = array<i64: 128, 384>}, {pipeline_mode = #tpu.pipeline_mode<synchronous>, transform_indices = @transform_2, window_bounds = array<i64: 1, 128>}, {transform_indices = @transform_3, window_bounds = array<i64: 8, 128>}, {transform_indices = @transform_4, window_bounds = array<i64: 8, 8, 128>}, {transform_indices = @transform_5, window_bounds = array<i64: 8, 128>}]} {
    %c0_i32 = arith.constant 0 : i32
    %0 = arith.cmpi eq, %arg1, %c0_i32 : i32
    %1 = arith.extui %0 : i1 to i32
    %c0_i32_0 = arith.constant 0 : i32
    %2 = arith.cmpi ne, %1, %c0_i32_0 : i32
    scf.if %2 {
      %c0_104 = arith.constant 0 : index
      %c0_105 = arith.constant 0 : index
      %321 = vector.load %arg5[%c0_104, %c0_105] : memref<8x128xf32, #tpu.memory_space<vmem>>, vector<8x128xf32>
      %c0_106 = arith.constant 0 : index
      %c0_107 = arith.constant 0 : index
      %322 = vector.load %arg7[%c0_106, %c0_107] : memref<8x128xf32, #tpu.memory_space<vmem>>, vector<8x128xf32>
      tpu.vector_store %arg7[%c0_106, %c0_107], %321 {strides = array<i32>} : memref<8x128xf32, #tpu.memory_space<vmem>>, vector<8x128xf32>,
    } else {
    }
    %c0 = arith.constant 0 : index
    %c0_1 = arith.constant 0 : index
    %3 = vector.load %arg3[%c0, %c0_1] : memref<128x384xf32, #tpu.memory_space<vmem>>, vector<128x384xf32>
    %c0_2 = arith.constant 0 : index
    %c0_3 = arith.constant 0 : index
    %4 = vector.load %arg4[%c0_2, %c0_3] : memref<1x128xf32, #tpu.memory_space<vmem>>, vector<1x128xf32>
    %5 = vector.shape_cast %4 : vector<1x128xf32> to vector<1x128xf32>
    %6 = vector.broadcast %5 : vector<1x128xf32> to vector<8x128xf32>
    %c0_4 = arith.constant 0 : index
    %c0_5 = arith.constant 0 : index
    %7 = vector.load %arg7[%c0_4, %c0_5] : memref<8x128xf32, #tpu.memory_space<vmem>>, vector<8x128xf32>
    %c0_i32_6 = arith.constant 0 : i32
    %8 = arith.index_cast %c0_i32_6 : i32 to index
    %c0_7 = arith.constant 0 : index
    %c0_8 = arith.constant 0 : index
    %9 = vector.load %arg2[%8, %c0_7, %c0_8] : memref<8x8x384xf32, #tpu.memory_space<vmem>>, vector<1x8x384xf32>
    %10 = vector.shape_cast %9 : vector<1x8x384xf32> to vector<8x384xf32>
    %cst = arith.constant dense<0.000000e+00> : vector<8x384xf32>
    %11 = tpu.matmul %7, %3, %cst {dimension_numbers = #tpu.dot_dimension_numbers<[1], [0], [0], [1], [0, 0, 1, 1], [], []>} : vector<8x128xf32>, vector<128x384xf32>, vector<8x384xf32> -> vector<8x384xf32>
    %12 = vector.extract_strided_slice %10 {offsets = [0, 0], sizes = [8, 128], strides = [1, 1]} : vector<8x384xf32> to vector<8x128xf32>
    %13 = vector.extract_strided_slice %11 {offsets = [0, 0], sizes = [8, 128], strides = [1, 1]} : vector<8x384xf32> to vector<8x128xf32>
    %14 = arith.addf %12, %13 : vector<8x128xf32>
    %cst_9 = arith.constant 5.000000e-01 : f32
    %15 = vector.broadcast %cst_9 : f32 to vector<8x128xf32>
    %16 = arith.mulf %15, %14 : vector<8x128xf32>
    %17 = math.tanh %16 : vector<8x128xf32>
    %cst_10 = arith.constant 5.000000e-01 : f32
    %18 = vector.broadcast %cst_10 : f32 to vector<8x128xf32>
    %19 = arith.mulf %18, %17 : vector<8x128xf32>
    %cst_11 = arith.constant 5.000000e-01 : f32
    %20 = vector.broadcast %cst_11 : f32 to vector<8x128xf32>
    %21 = arith.addf %19, %20 : vector<8x128xf32>
    %22 = vector.extract_strided_slice %10 {offsets = [0, 128], sizes = [8, 128], strides = [1, 1]} : vector<8x384xf32> to vector<8x128xf32>
    %23 = vector.extract_strided_slice %11 {offsets = [0, 128], sizes = [8, 128], strides = [1, 1]} : vector<8x384xf32> to vector<8x128xf32>
    %24 = arith.addf %22, %23 : vector<8x128xf32>
    %cst_12 = arith.constant 5.000000e-01 : f32
    %25 = vector.broadcast %cst_12 : f32 to vector<8x128xf32>
    %26 = arith.mulf %25, %24 : vector<8x128xf32>
    %27 = math.tanh %26 : vector<8x128xf32>
    %cst_13 = arith.constant 5.000000e-01 : f32
    %28 = vector.broadcast %cst_13 : f32 to vector<8x128xf32>
    %29 = arith.mulf %28, %27 : vector<8x128xf32>
    %cst_14 = arith.constant 5.000000e-01 : f32
    %30 = vector.broadcast %cst_14 : f32 to vector<8x128xf32>
    %31 = arith.addf %29, %30 : vector<8x128xf32>
    %32 = vector.extract_strided_slice %10 {offsets = [0, 256], sizes = [8, 128], strides = [1, 1]} : vector<8x384xf32> to vector<8x128xf32>
    %33 = vector.extract_strided_slice %11 {offsets = [0, 256], sizes = [8, 128], strides = [1, 1]} : vector<8x384xf32> to vector<8x128xf32>
    %34 = arith.addf %33, %6 : vector<8x128xf32>
    %35 = arith.mulf %21, %34 : vector<8x128xf32>
    %36 = arith.addf %32, %35 : vector<8x128xf32>
    %37 = math.tanh %36 : vector<8x128xf32>
    %cst_15 = arith.constant 1.000000e+00 : f32
    %38 = vector.broadcast %cst_15 : f32 to vector<8x128xf32>
    %39 = arith.subf %38, %31 : vector<8x128xf32>
    %40 = arith.mulf %39, %37 : vector<8x128xf32>
    %41 = arith.mulf %31, %7 : vector<8x128xf32>
    %42 = arith.addf %40, %41 : vector<8x128xf32>
    %43 = arith.index_cast %c0_i32_6 : i32 to index
    %c0_16 = arith.constant 0 : index
    %c0_17 = arith.constant 0 : index
    %44 = vector.load %arg6[%43, %c0_16, %c0_17] : memref<8x8x128xf32, #tpu.memory_space<vmem>>, vector<1x8x128xf32>
    %45 = vector.shape_cast %44 : vector<1x8x128xf32> to vector<8x128xf32>
    %46 = vector.shape_cast %42 : vector<8x128xf32> to vector<1x8x128xf32>
    tpu.vector_store %arg6[%43, %c0_16, %c0_17], %46 {strides = array<i32>} : memref<8x8x128xf32, #tpu.memory_space<vmem>>, vector<1x8x128xf32>,
    %c1_i32 = arith.constant 1 : i32
    %47 = arith.index_cast %c1_i32 : i32 to index
    %c0_18 = arith.constant 0 : index
    %c0_19 = arith.constant 0 : index
    %48 = vector.load %arg2[%47, %c0_18, %c0_19] : memref<8x8x384xf32, #tpu.memory_space<vmem>>, vector<1x8x384xf32>
    %49 = vector.shape_cast %48 : vector<1x8x384xf32> to vector<8x384xf32>
    %cst_20 = arith.constant dense<0.000000e+00> : vector<8x384xf32>
    %50 = tpu.matmul %42, %3, %cst_20 {dimension_numbers = #tpu.dot_dimension_numbers<[1], [0], [0], [1], [0, 0, 1, 1], [], []>} : vector<8x128xf32>, vector<128x384xf32>, vector<8x384xf32> -> vector<8x384xf32>
    %51 = vector.extract_strided_slice %49 {offsets = [0, 0], sizes = [8, 128], strides = [1, 1]} : vector<8x384xf32> to vector<8x128xf32>
    %52 = vector.extract_strided_slice %50 {offsets = [0, 0], sizes = [8, 128], strides = [1, 1]} : vector<8x384xf32> to vector<8x128xf32>
    %53 = arith.addf %51, %52 : vector<8x128xf32>
    %cst_21 = arith.constant 5.000000e-01 : f32
    %54 = vector.broadcast %cst_21 : f32 to vector<8x128xf32>
    %55 = arith.mulf %54, %53 : vector<8x128xf32>
    %56 = math.tanh %55 : vector<8x128xf32>
    %cst_22 = arith.constant 5.000000e-01 : f32
    %57 = vector.broadcast %cst_22 : f32 to vector<8x128xf32>
    %58 = arith.mulf %57, %56 : vector<8x128xf32>
    %cst_23 = arith.constant 5.000000e-01 : f32
    %59 = vector.broadcast %cst_23 : f32 to vector<8x128xf32>
    %60 = arith.addf %58, %59 : vector<8x128xf32>
    %61 = vector.extract_strided_slice %49 {offsets = [0, 128], sizes = [8, 128], strides = [1, 1]} : vector<8x384xf32> to vector<8x128xf32>
    %62 = vector.extract_strided_slice %50 {offsets = [0, 128], sizes = [8, 128], strides = [1, 1]} : vector<8x384xf32> to vector<8x128xf32>
    %63 = arith.addf %61, %62 : vector<8x128xf32>
    %cst_24 = arith.constant 5.000000e-01 : f32
    %64 = vector.broadcast %cst_24 : f32 to vector<8x128xf32>
    %65 = arith.mulf %64, %63 : vector<8x128xf32>
    %66 = math.tanh %65 : vector<8x128xf32>
    %cst_25 = arith.constant 5.000000e-01 : f32
    %67 = vector.broadcast %cst_25 : f32 to vector<8x128xf32>
    %68 = arith.mulf %67, %66 : vector<8x128xf32>
    %cst_26 = arith.constant 5.000000e-01 : f32
    %69 = vector.broadcast %cst_26 : f32 to vector<8x128xf32>
    %70 = arith.addf %68, %69 : vector<8x128xf32>
    %71 = vector.extract_strided_slice %49 {offsets = [0, 256], sizes = [8, 128], strides = [1, 1]} : vector<8x384xf32> to vector<8x128xf32>
    %72 = vector.extract_strided_slice %50 {offsets = [0, 256], sizes = [8, 128], strides = [1, 1]} : vector<8x384xf32> to vector<8x128xf32>
    %73 = arith.addf %72, %6 : vector<8x128xf32>
    %74 = arith.mulf %60, %73 : vector<8x128xf32>
    %75 = arith.addf %71, %74 : vector<8x128xf32>
    %76 = math.tanh %75 : vector<8x128xf32>
    %cst_27 = arith.constant 1.000000e+00 : f32
    %77 = vector.broadcast %cst_27 : f32 to vector<8x128xf32>
    %78 = arith.subf %77, %70 : vector<8x128xf32>
    %79 = arith.mulf %78, %76 : vector<8x128xf32>
    %80 = arith.mulf %70, %42 : vector<8x128xf32>
    %81 = arith.addf %79, %80 : vector<8x128xf32>
    %82 = arith.index_cast %c1_i32 : i32 to index
    %c0_28 = arith.constant 0 : index
    %c0_29 = arith.constant 0 : index
    %83 = vector.load %arg6[%82, %c0_28, %c0_29] : memref<8x8x128xf32, #tpu.memory_space<vmem>>, vector<1x8x128xf32>
    %84 = vector.shape_cast %83 : vector<1x8x128xf32> to vector<8x128xf32>
    %85 = vector.shape_cast %81 : vector<8x128xf32> to vector<1x8x128xf32>
    tpu.vector_store %arg6[%82, %c0_28, %c0_29], %85 {strides = array<i32>} : memref<8x8x128xf32, #tpu.memory_space<vmem>>, vector<1x8x128xf32>,
    %c2_i32 = arith.constant 2 : i32
    %86 = arith.index_cast %c2_i32 : i32 to index
    %c0_30 = arith.constant 0 : index
    %c0_31 = arith.constant 0 : index
    %87 = vector.load %arg2[%86, %c0_30, %c0_31] : memref<8x8x384xf32, #tpu.memory_space<vmem>>, vector<1x8x384xf32>
    %88 = vector.shape_cast %87 : vector<1x8x384xf32> to vector<8x384xf32>
    %cst_32 = arith.constant dense<0.000000e+00> : vector<8x384xf32>
    %89 = tpu.matmul %81, %3, %cst_32 {dimension_numbers = #tpu.dot_dimension_numbers<[1], [0], [0], [1], [0, 0, 1, 1], [], []>} : vector<8x128xf32>, vector<128x384xf32>, vector<8x384xf32> -> vector<8x384xf32>
    %90 = vector.extract_strided_slice %88 {offsets = [0, 0], sizes = [8, 128], strides = [1, 1]} : vector<8x384xf32> to vector<8x128xf32>
    %91 = vector.extract_strided_slice %89 {offsets = [0, 0], sizes = [8, 128], strides = [1, 1]} : vector<8x384xf32> to vector<8x128xf32>
    %92 = arith.addf %90, %91 : vector<8x128xf32>
    %cst_33 = arith.constant 5.000000e-01 : f32
    %93 = vector.broadcast %cst_33 : f32 to vector<8x128xf32>
    %94 = arith.mulf %93, %92 : vector<8x128xf32>
    %95 = math.tanh %94 : vector<8x128xf32>
    %cst_34 = arith.constant 5.000000e-01 : f32
    %96 = vector.broadcast %cst_34 : f32 to vector<8x128xf32>
    %97 = arith.mulf %96, %95 : vector<8x128xf32>
    %cst_35 = arith.constant 5.000000e-01 : f32
    %98 = vector.broadcast %cst_35 : f32 to vector<8x128xf32>
    %99 = arith.addf %97, %98 : vector<8x128xf32>
    %100 = vector.extract_strided_slice %88 {offsets = [0, 128], sizes = [8, 128], strides = [1, 1]} : vector<8x384xf32> to vector<8x128xf32>
    %101 = vector.extract_strided_slice %89 {offsets = [0, 128], sizes = [8, 128], strides = [1, 1]} : vector<8x384xf32> to vector<8x128xf32>
    %102 = arith.addf %100, %101 : vector<8x128xf32>
    %cst_36 = arith.constant 5.000000e-01 : f32
    %103 = vector.broadcast %cst_36 : f32 to vector<8x128xf32>
    %104 = arith.mulf %103, %102 : vector<8x128xf32>
    %105 = math.tanh %104 : vector<8x128xf32>
    %cst_37 = arith.constant 5.000000e-01 : f32
    %106 = vector.broadcast %cst_37 : f32 to vector<8x128xf32>
    %107 = arith.mulf %106, %105 : vector<8x128xf32>
    %cst_38 = arith.constant 5.000000e-01 : f32
    %108 = vector.broadcast %cst_38 : f32 to vector<8x128xf32>
    %109 = arith.addf %107, %108 : vector<8x128xf32>
    %110 = vector.extract_strided_slice %88 {offsets = [0, 256], sizes = [8, 128], strides = [1, 1]} : vector<8x384xf32> to vector<8x128xf32>
    %111 = vector.extract_strided_slice %89 {offsets = [0, 256], sizes = [8, 128], strides = [1, 1]} : vector<8x384xf32> to vector<8x128xf32>
    %112 = arith.addf %111, %6 : vector<8x128xf32>
    %113 = arith.mulf %99, %112 : vector<8x128xf32>
    %114 = arith.addf %110, %113 : vector<8x128xf32>
    %115 = math.tanh %114 : vector<8x128xf32>
    %cst_39 = arith.constant 1.000000e+00 : f32
    %116 = vector.broadcast %cst_39 : f32 to vector<8x128xf32>
    %117 = arith.subf %116, %109 : vector<8x128xf32>
    %118 = arith.mulf %117, %115 : vector<8x128xf32>
    %119 = arith.mulf %109, %81 : vector<8x128xf32>
    %120 = arith.addf %118, %119 : vector<8x128xf32>
    %121 = arith.index_cast %c2_i32 : i32 to index
    %c0_40 = arith.constant 0 : index
    %c0_41 = arith.constant 0 : index
    %122 = vector.load %arg6[%121, %c0_40, %c0_41] : memref<8x8x128xf32, #tpu.memory_space<vmem>>, vector<1x8x128xf32>
    %123 = vector.shape_cast %122 : vector<1x8x128xf32> to vector<8x128xf32>
    %124 = vector.shape_cast %120 : vector<8x128xf32> to vector<1x8x128xf32>
    tpu.vector_store %arg6[%121, %c0_40, %c0_41], %124 {strides = array<i32>} : memref<8x8x128xf32, #tpu.memory_space<vmem>>, vector<1x8x128xf32>,
    %c3_i32 = arith.constant 3 : i32
    %125 = arith.index_cast %c3_i32 : i32 to index
    %c0_42 = arith.constant 0 : index
    %c0_43 = arith.constant 0 : index
    %126 = vector.load %arg2[%125, %c0_42, %c0_43] : memref<8x8x384xf32, #tpu.memory_space<vmem>>, vector<1x8x384xf32>
    %127 = vector.shape_cast %126 : vector<1x8x384xf32> to vector<8x384xf32>
    %cst_44 = arith.constant dense<0.000000e+00> : vector<8x384xf32>
    %128 = tpu.matmul %120, %3, %cst_44 {dimension_numbers = #tpu.dot_dimension_numbers<[1], [0], [0], [1], [0, 0, 1, 1], [], []>} : vector<8x128xf32>, vector<128x384xf32>, vector<8x384xf32> -> vector<8x384xf32>
    %129 = vector.extract_strided_slice %127 {offsets = [0, 0], sizes = [8, 128], strides = [1, 1]} : vector<8x384xf32> to vector<8x128xf32>
    %130 = vector.extract_strided_slice %128 {offsets = [0, 0], sizes = [8, 128], strides = [1, 1]} : vector<8x384xf32> to vector<8x128xf32>
    %131 = arith.addf %129, %130 : vector<8x128xf32>
    %cst_45 = arith.constant 5.000000e-01 : f32
    %132 = vector.broadcast %cst_45 : f32 to vector<8x128xf32>
    %133 = arith.mulf %132, %131 : vector<8x128xf32>
    %134 = math.tanh %133 : vector<8x128xf32>
    %cst_46 = arith.constant 5.000000e-01 : f32
    %135 = vector.broadcast %cst_46 : f32 to vector<8x128xf32>
    %136 = arith.mulf %135, %134 : vector<8x128xf32>
    %cst_47 = arith.constant 5.000000e-01 : f32
    %137 = vector.broadcast %cst_47 : f32 to vector<8x128xf32>
    %138 = arith.addf %136, %137 : vector<8x128xf32>
    %139 = vector.extract_strided_slice %127 {offsets = [0, 128], sizes = [8, 128], strides = [1, 1]} : vector<8x384xf32> to vector<8x128xf32>
    %140 = vector.extract_strided_slice %128 {offsets = [0, 128], sizes = [8, 128], strides = [1, 1]} : vector<8x384xf32> to vector<8x128xf32>
    %141 = arith.addf %139, %140 : vector<8x128xf32>
    %cst_48 = arith.constant 5.000000e-01 : f32
    %142 = vector.broadcast %cst_48 : f32 to vector<8x128xf32>
    %143 = arith.mulf %142, %141 : vector<8x128xf32>
    %144 = math.tanh %143 : vector<8x128xf32>
    %cst_49 = arith.constant 5.000000e-01 : f32
    %145 = vector.broadcast %cst_49 : f32 to vector<8x128xf32>
    %146 = arith.mulf %145, %144 : vector<8x128xf32>
    %cst_50 = arith.constant 5.000000e-01 : f32
    %147 = vector.broadcast %cst_50 : f32 to vector<8x128xf32>
    %148 = arith.addf %146, %147 : vector<8x128xf32>
    %149 = vector.extract_strided_slice %127 {offsets = [0, 256], sizes = [8, 128], strides = [1, 1]} : vector<8x384xf32> to vector<8x128xf32>
    %150 = vector.extract_strided_slice %128 {offsets = [0, 256], sizes = [8, 128], strides = [1, 1]} : vector<8x384xf32> to vector<8x128xf32>
    %151 = arith.addf %150, %6 : vector<8x128xf32>
    %152 = arith.mulf %138, %151 : vector<8x128xf32>
    %153 = arith.addf %149, %152 : vector<8x128xf32>
    %154 = math.tanh %153 : vector<8x128xf32>
    %cst_51 = arith.constant 1.000000e+00 : f32
    %155 = vector.broadcast %cst_51 : f32 to vector<8x128xf32>
    %156 = arith.subf %155, %148 : vector<8x128xf32>
    %157 = arith.mulf %156, %154 : vector<8x128xf32>
    %158 = arith.mulf %148, %120 : vector<8x128xf32>
    %159 = arith.addf %157, %158 : vector<8x128xf32>
    %160 = arith.index_cast %c3_i32 : i32 to index
    %c0_52 = arith.constant 0 : index
    %c0_53 = arith.constant 0 : index
    %161 = vector.load %arg6[%160, %c0_52, %c0_53] : memref<8x8x128xf32, #tpu.memory_space<vmem>>, vector<1x8x128xf32>
    %162 = vector.shape_cast %161 : vector<1x8x128xf32> to vector<8x128xf32>
    %163 = vector.shape_cast %159 : vector<8x128xf32> to vector<1x8x128xf32>
    tpu.vector_store %arg6[%160, %c0_52, %c0_53], %163 {strides = array<i32>} : memref<8x8x128xf32, #tpu.memory_space<vmem>>, vector<1x8x128xf32>,
    %c4_i32 = arith.constant 4 : i32
    %164 = arith.index_cast %c4_i32 : i32 to index
    %c0_54 = arith.constant 0 : index
    %c0_55 = arith.constant 0 : index
    %165 = vector.load %arg2[%164, %c0_54, %c0_55] : memref<8x8x384xf32, #tpu.memory_space<vmem>>, vector<1x8x384xf32>
    %166 = vector.shape_cast %165 : vector<1x8x384xf32> to vector<8x384xf32>
    %cst_56 = arith.constant dense<0.000000e+00> : vector<8x384xf32>
    %167 = tpu.matmul %159, %3, %cst_56 {dimension_numbers = #tpu.dot_dimension_numbers<[1], [0], [0], [1], [0, 0, 1, 1], [], []>} : vector<8x128xf32>, vector<128x384xf32>, vector<8x384xf32> -> vector<8x384xf32>
    %168 = vector.extract_strided_slice %166 {offsets = [0, 0], sizes = [8, 128], strides = [1, 1]} : vector<8x384xf32> to vector<8x128xf32>
    %169 = vector.extract_strided_slice %167 {offsets = [0, 0], sizes = [8, 128], strides = [1, 1]} : vector<8x384xf32> to vector<8x128xf32>
    %170 = arith.addf %168, %169 : vector<8x128xf32>
    %cst_57 = arith.constant 5.000000e-01 : f32
    %171 = vector.broadcast %cst_57 : f32 to vector<8x128xf32>
    %172 = arith.mulf %171, %170 : vector<8x128xf32>
    %173 = math.tanh %172 : vector<8x128xf32>
    %cst_58 = arith.constant 5.000000e-01 : f32
    %174 = vector.broadcast %cst_58 : f32 to vector<8x128xf32>
    %175 = arith.mulf %174, %173 : vector<8x128xf32>
    %cst_59 = arith.constant 5.000000e-01 : f32
    %176 = vector.broadcast %cst_59 : f32 to vector<8x128xf32>
    %177 = arith.addf %175, %176 : vector<8x128xf32>
    %178 = vector.extract_strided_slice %166 {offsets = [0, 128], sizes = [8, 128], strides = [1, 1]} : vector<8x384xf32> to vector<8x128xf32>
    %179 = vector.extract_strided_slice %167 {offsets = [0, 128], sizes = [8, 128], strides = [1, 1]} : vector<8x384xf32> to vector<8x128xf32>
    %180 = arith.addf %178, %179 : vector<8x128xf32>
    %cst_60 = arith.constant 5.000000e-01 : f32
    %181 = vector.broadcast %cst_60 : f32 to vector<8x128xf32>
    %182 = arith.mulf %181, %180 : vector<8x128xf32>
    %183 = math.tanh %182 : vector<8x128xf32>
    %cst_61 = arith.constant 5.000000e-01 : f32
    %184 = vector.broadcast %cst_61 : f32 to vector<8x128xf32>
    %185 = arith.mulf %184, %183 : vector<8x128xf32>
    %cst_62 = arith.constant 5.000000e-01 : f32
    %186 = vector.broadcast %cst_62 : f32 to vector<8x128xf32>
    %187 = arith.addf %185, %186 : vector<8x128xf32>
    %188 = vector.extract_strided_slice %166 {offsets = [0, 256], sizes = [8, 128], strides = [1, 1]} : vector<8x384xf32> to vector<8x128xf32>
    %189 = vector.extract_strided_slice %167 {offsets = [0, 256], sizes = [8, 128], strides = [1, 1]} : vector<8x384xf32> to vector<8x128xf32>
    %190 = arith.addf %189, %6 : vector<8x128xf32>
    %191 = arith.mulf %177, %190 : vector<8x128xf32>
    %192 = arith.addf %188, %191 : vector<8x128xf32>
    %193 = math.tanh %192 : vector<8x128xf32>
    %cst_63 = arith.constant 1.000000e+00 : f32
    %194 = vector.broadcast %cst_63 : f32 to vector<8x128xf32>
    %195 = arith.subf %194, %187 : vector<8x128xf32>
    %196 = arith.mulf %195, %193 : vector<8x128xf32>
    %197 = arith.mulf %187, %159 : vector<8x128xf32>
    %198 = arith.addf %196, %197 : vector<8x128xf32>
    %199 = arith.index_cast %c4_i32 : i32 to index
    %c0_64 = arith.constant 0 : index
    %c0_65 = arith.constant 0 : index
    %200 = vector.load %arg6[%199, %c0_64, %c0_65] : memref<8x8x128xf32, #tpu.memory_space<vmem>>, vector<1x8x128xf32>
    %201 = vector.shape_cast %200 : vector<1x8x128xf32> to vector<8x128xf32>
    %202 = vector.shape_cast %198 : vector<8x128xf32> to vector<1x8x128xf32>
    tpu.vector_store %arg6[%199, %c0_64, %c0_65], %202 {strides = array<i32>} : memref<8x8x128xf32, #tpu.memory_space<vmem>>, vector<1x8x128xf32>,
    %c5_i32 = arith.constant 5 : i32
    %203 = arith.index_cast %c5_i32 : i32 to index
    %c0_66 = arith.constant 0 : index
    %c0_67 = arith.constant 0 : index
    %204 = vector.load %arg2[%203, %c0_66, %c0_67] : memref<8x8x384xf32, #tpu.memory_space<vmem>>, vector<1x8x384xf32>
    %205 = vector.shape_cast %204 : vector<1x8x384xf32> to vector<8x384xf32>
    %cst_68 = arith.constant dense<0.000000e+00> : vector<8x384xf32>
    %206 = tpu.matmul %198, %3, %cst_68 {dimension_numbers = #tpu.dot_dimension_numbers<[1], [0], [0], [1], [0, 0, 1, 1], [], []>} : vector<8x128xf32>, vector<128x384xf32>, vector<8x384xf32> -> vector<8x384xf32>
    %207 = vector.extract_strided_slice %205 {offsets = [0, 0], sizes = [8, 128], strides = [1, 1]} : vector<8x384xf32> to vector<8x128xf32>
    %208 = vector.extract_strided_slice %206 {offsets = [0, 0], sizes = [8, 128], strides = [1, 1]} : vector<8x384xf32> to vector<8x128xf32>
    %209 = arith.addf %207, %208 : vector<8x128xf32>
    %cst_69 = arith.constant 5.000000e-01 : f32
    %210 = vector.broadcast %cst_69 : f32 to vector<8x128xf32>
    %211 = arith.mulf %210, %209 : vector<8x128xf32>
    %212 = math.tanh %211 : vector<8x128xf32>
    %cst_70 = arith.constant 5.000000e-01 : f32
    %213 = vector.broadcast %cst_70 : f32 to vector<8x128xf32>
    %214 = arith.mulf %213, %212 : vector<8x128xf32>
    %cst_71 = arith.constant 5.000000e-01 : f32
    %215 = vector.broadcast %cst_71 : f32 to vector<8x128xf32>
    %216 = arith.addf %214, %215 : vector<8x128xf32>
    %217 = vector.extract_strided_slice %205 {offsets = [0, 128], sizes = [8, 128], strides = [1, 1]} : vector<8x384xf32> to vector<8x128xf32>
    %218 = vector.extract_strided_slice %206 {offsets = [0, 128], sizes = [8, 128], strides = [1, 1]} : vector<8x384xf32> to vector<8x128xf32>
    %219 = arith.addf %217, %218 : vector<8x128xf32>
    %cst_72 = arith.constant 5.000000e-01 : f32
    %220 = vector.broadcast %cst_72 : f32 to vector<8x128xf32>
    %221 = arith.mulf %220, %219 : vector<8x128xf32>
    %222 = math.tanh %221 : vector<8x128xf32>
    %cst_73 = arith.constant 5.000000e-01 : f32
    %223 = vector.broadcast %cst_73 : f32 to vector<8x128xf32>
    %224 = arith.mulf %223, %222 : vector<8x128xf32>
    %cst_74 = arith.constant 5.000000e-01 : f32
    %225 = vector.broadcast %cst_74 : f32 to vector<8x128xf32>
    %226 = arith.addf %224, %225 : vector<8x128xf32>
    %227 = vector.extract_strided_slice %205 {offsets = [0, 256], sizes = [8, 128], strides = [1, 1]} : vector<8x384xf32> to vector<8x128xf32>
    %228 = vector.extract_strided_slice %206 {offsets = [0, 256], sizes = [8, 128], strides = [1, 1]} : vector<8x384xf32> to vector<8x128xf32>
    %229 = arith.addf %228, %6 : vector<8x128xf32>
    %230 = arith.mulf %216, %229 : vector<8x128xf32>
    %231 = arith.addf %227, %230 : vector<8x128xf32>
    %232 = math.tanh %231 : vector<8x128xf32>
    %cst_75 = arith.constant 1.000000e+00 : f32
    %233 = vector.broadcast %cst_75 : f32 to vector<8x128xf32>
    %234 = arith.subf %233, %226 : vector<8x128xf32>
    %235 = arith.mulf %234, %232 : vector<8x128xf32>
    %236 = arith.mulf %226, %198 : vector<8x128xf32>
    %237 = arith.addf %235, %236 : vector<8x128xf32>
    %238 = arith.index_cast %c5_i32 : i32 to index
    %c0_76 = arith.constant 0 : index
    %c0_77 = arith.constant 0 : index
    %239 = vector.load %arg6[%238, %c0_76, %c0_77] : memref<8x8x128xf32, #tpu.memory_space<vmem>>, vector<1x8x128xf32>
    %240 = vector.shape_cast %239 : vector<1x8x128xf32> to vector<8x128xf32>
    %241 = vector.shape_cast %237 : vector<8x128xf32> to vector<1x8x128xf32>
    tpu.vector_store %arg6[%238, %c0_76, %c0_77], %241 {strides = array<i32>} : memref<8x8x128xf32, #tpu.memory_space<vmem>>, vector<1x8x128xf32>,
    %c6_i32 = arith.constant 6 : i32
    %242 = arith.index_cast %c6_i32 : i32 to index
    %c0_78 = arith.constant 0 : index
    %c0_79 = arith.constant 0 : index
    %243 = vector.load %arg2[%242, %c0_78, %c0_79] : memref<8x8x384xf32, #tpu.memory_space<vmem>>, vector<1x8x384xf32>
    %244 = vector.shape_cast %243 : vector<1x8x384xf32> to vector<8x384xf32>
    %cst_80 = arith.constant dense<0.000000e+00> : vector<8x384xf32>
    %245 = tpu.matmul %237, %3, %cst_80 {dimension_numbers = #tpu.dot_dimension_numbers<[1], [0], [0], [1], [0, 0, 1, 1], [], []>} : vector<8x128xf32>, vector<128x384xf32>, vector<8x384xf32> -> vector<8x384xf32>
    %246 = vector.extract_strided_slice %244 {offsets = [0, 0], sizes = [8, 128], strides = [1, 1]} : vector<8x384xf32> to vector<8x128xf32>
    %247 = vector.extract_strided_slice %245 {offsets = [0, 0], sizes = [8, 128], strides = [1, 1]} : vector<8x384xf32> to vector<8x128xf32>
    %248 = arith.addf %246, %247 : vector<8x128xf32>
    %cst_81 = arith.constant 5.000000e-01 : f32
    %249 = vector.broadcast %cst_81 : f32 to vector<8x128xf32>
    %250 = arith.mulf %249, %248 : vector<8x128xf32>
    %251 = math.tanh %250 : vector<8x128xf32>
    %cst_82 = arith.constant 5.000000e-01 : f32
    %252 = vector.broadcast %cst_82 : f32 to vector<8x128xf32>
    %253 = arith.mulf %252, %251 : vector<8x128xf32>
    %cst_83 = arith.constant 5.000000e-01 : f32
    %254 = vector.broadcast %cst_83 : f32 to vector<8x128xf32>
    %255 = arith.addf %253, %254 : vector<8x128xf32>
    %256 = vector.extract_strided_slice %244 {offsets = [0, 128], sizes = [8, 128], strides = [1, 1]} : vector<8x384xf32> to vector<8x128xf32>
    %257 = vector.extract_strided_slice %245 {offsets = [0, 128], sizes = [8, 128], strides = [1, 1]} : vector<8x384xf32> to vector<8x128xf32>
    %258 = arith.addf %256, %257 : vector<8x128xf32>
    %cst_84 = arith.constant 5.000000e-01 : f32
    %259 = vector.broadcast %cst_84 : f32 to vector<8x128xf32>
    %260 = arith.mulf %259, %258 : vector<8x128xf32>
    %261 = math.tanh %260 : vector<8x128xf32>
    %cst_85 = arith.constant 5.000000e-01 : f32
    %262 = vector.broadcast %cst_85 : f32 to vector<8x128xf32>
    %263 = arith.mulf %262, %261 : vector<8x128xf32>
    %cst_86 = arith.constant 5.000000e-01 : f32
    %264 = vector.broadcast %cst_86 : f32 to vector<8x128xf32>
    %265 = arith.addf %263, %264 : vector<8x128xf32>
    %266 = vector.extract_strided_slice %244 {offsets = [0, 256], sizes = [8, 128], strides = [1, 1]} : vector<8x384xf32> to vector<8x128xf32>
    %267 = vector.extract_strided_slice %245 {offsets = [0, 256], sizes = [8, 128], strides = [1, 1]} : vector<8x384xf32> to vector<8x128xf32>
    %268 = arith.addf %267, %6 : vector<8x128xf32>
    %269 = arith.mulf %255, %268 : vector<8x128xf32>
    %270 = arith.addf %266, %269 : vector<8x128xf32>
    %271 = math.tanh %270 : vector<8x128xf32>
    %cst_87 = arith.constant 1.000000e+00 : f32
    %272 = vector.broadcast %cst_87 : f32 to vector<8x128xf32>
    %273 = arith.subf %272, %265 : vector<8x128xf32>
    %274 = arith.mulf %273, %271 : vector<8x128xf32>
    %275 = arith.mulf %265, %237 : vector<8x128xf32>
    %276 = arith.addf %274, %275 : vector<8x128xf32>
    %277 = arith.index_cast %c6_i32 : i32 to index
    %c0_88 = arith.constant 0 : index
    %c0_89 = arith.constant 0 : index
    %278 = vector.load %arg6[%277, %c0_88, %c0_89] : memref<8x8x128xf32, #tpu.memory_space<vmem>>, vector<1x8x128xf32>
    %279 = vector.shape_cast %278 : vector<1x8x128xf32> to vector<8x128xf32>
    %280 = vector.shape_cast %276 : vector<8x128xf32> to vector<1x8x128xf32>
    tpu.vector_store %arg6[%277, %c0_88, %c0_89], %280 {strides = array<i32>} : memref<8x8x128xf32, #tpu.memory_space<vmem>>, vector<1x8x128xf32>,
    %c7_i32 = arith.constant 7 : i32
    %281 = arith.index_cast %c7_i32 : i32 to index
    %c0_90 = arith.constant 0 : index
    %c0_91 = arith.constant 0 : index
    %282 = vector.load %arg2[%281, %c0_90, %c0_91] : memref<8x8x384xf32, #tpu.memory_space<vmem>>, vector<1x8x384xf32>
    %283 = vector.shape_cast %282 : vector<1x8x384xf32> to vector<8x384xf32>
    %cst_92 = arith.constant dense<0.000000e+00> : vector<8x384xf32>
    %284 = tpu.matmul %276, %3, %cst_92 {dimension_numbers = #tpu.dot_dimension_numbers<[1], [0], [0], [1], [0, 0, 1, 1], [], []>} : vector<8x128xf32>, vector<128x384xf32>, vector<8x384xf32> -> vector<8x384xf32>
    %285 = vector.extract_strided_slice %283 {offsets = [0, 0], sizes = [8, 128], strides = [1, 1]} : vector<8x384xf32> to vector<8x128xf32>
    %286 = vector.extract_strided_slice %284 {offsets = [0, 0], sizes = [8, 128], strides = [1, 1]} : vector<8x384xf32> to vector<8x128xf32>
    %287 = arith.addf %285, %286 : vector<8x128xf32>
    %cst_93 = arith.constant 5.000000e-01 : f32
    %288 = vector.broadcast %cst_93 : f32 to vector<8x128xf32>
    %289 = arith.mulf %288, %287 : vector<8x128xf32>
    %290 = math.tanh %289 : vector<8x128xf32>
    %cst_94 = arith.constant 5.000000e-01 : f32
    %291 = vector.broadcast %cst_94 : f32 to vector<8x128xf32>
    %292 = arith.mulf %291, %290 : vector<8x128xf32>
    %cst_95 = arith.constant 5.000000e-01 : f32
    %293 = vector.broadcast %cst_95 : f32 to vector<8x128xf32>
    %294 = arith.addf %292, %293 : vector<8x128xf32>
    %295 = vector.extract_strided_slice %283 {offsets = [0, 128], sizes = [8, 128], strides = [1, 1]} : vector<8x384xf32> to vector<8x128xf32>
    %296 = vector.extract_strided_slice %284 {offsets = [0, 128], sizes = [8, 128], strides = [1, 1]} : vector<8x384xf32> to vector<8x128xf32>
    %297 = arith.addf %295, %296 : vector<8x128xf32>
    %cst_96 = arith.constant 5.000000e-01 : f32
    %298 = vector.broadcast %cst_96 : f32 to vector<8x128xf32>
    %299 = arith.mulf %298, %297 : vector<8x128xf32>
    %300 = math.tanh %299 : vector<8x128xf32>
    %cst_97 = arith.constant 5.000000e-01 : f32
    %301 = vector.broadcast %cst_97 : f32 to vector<8x128xf32>
    %302 = arith.mulf %301, %300 : vector<8x128xf32>
    %cst_98 = arith.constant 5.000000e-01 : f32
    %303 = vector.broadcast %cst_98 : f32 to vector<8x128xf32>
    %304 = arith.addf %302, %303 : vector<8x128xf32>
    %305 = vector.extract_strided_slice %283 {offsets = [0, 256], sizes = [8, 128], strides = [1, 1]} : vector<8x384xf32> to vector<8x128xf32>
    %306 = vector.extract_strided_slice %284 {offsets = [0, 256], sizes = [8, 128], strides = [1, 1]} : vector<8x384xf32> to vector<8x128xf32>
    %307 = arith.addf %306, %6 : vector<8x128xf32>
    %308 = arith.mulf %294, %307 : vector<8x128xf32>
    %309 = arith.addf %305, %308 : vector<8x128xf32>
    %310 = math.tanh %309 : vector<8x128xf32>
    %cst_99 = arith.constant 1.000000e+00 : f32
    %311 = vector.broadcast %cst_99 : f32 to vector<8x128xf32>
    %312 = arith.subf %311, %304 : vector<8x128xf32>
    %313 = arith.mulf %312, %310 : vector<8x128xf32>
    %314 = arith.mulf %304, %276 : vector<8x128xf32>
    %315 = arith.addf %313, %314 : vector<8x128xf32>
    %316 = arith.index_cast %c7_i32 : i32 to index
    %c0_100 = arith.constant 0 : index
    %c0_101 = arith.constant 0 : index
    %317 = vector.load %arg6[%316, %c0_100, %c0_101] : memref<8x8x128xf32, #tpu.memory_space<vmem>>, vector<1x8x128xf32>
    %318 = vector.shape_cast %317 : vector<1x8x128xf32> to vector<8x128xf32>
    %319 = vector.shape_cast %315 : vector<8x128xf32> to vector<1x8x128xf32>
    tpu.vector_store %arg6[%316, %c0_100, %c0_101], %319 {strides = array<i32>} : memref<8x8x128xf32, #tpu.memory_space<vmem>>, vector<1x8x128xf32>,
    %c8_i32 = arith.constant 8 : i32
    %c0_102 = arith.constant 0 : index
    %c0_103 = arith.constant 0 : index
    %320 = vector.load %arg7[%c0_102, %c0_103] : memref<8x128xf32, #tpu.memory_space<vmem>>, vector<8x128xf32>
    tpu.vector_store %arg7[%c0_102, %c0_103], %315 {strides = array<i32>} : memref<8x128xf32, #tpu.memory_space<vmem>>, vector<8x128xf32>,
    return
  }
  func.func @transform_0(%arg0: i32, %arg1: i32) -> (i32, i32, i32) {
    %c0_i32 = arith.constant 0 : i32
    %c0_i32_0 = arith.constant 0 : i32
    return %arg1, %arg0, %c0_i32 : i32, i32, i32
  }
  func.func @transform_1(%arg0: i32, %arg1: i32) -> (i32, i32) {
    %c0_i32 = arith.constant 0 : i32
    %c0_i32_0 = arith.constant 0 : i32
    %c0_i32_1 = arith.constant 0 : i32
    return %c0_i32, %c0_i32_0 : i32, i32
  }
  func.func @transform_2(%arg0: i32, %arg1: i32) -> (i32, i32) {
    %c0_i32 = arith.constant 0 : i32
    %c0_i32_0 = arith.constant 0 : i32
    %c0_i32_1 = arith.constant 0 : i32
    return %c0_i32, %c0_i32_0 : i32, i32
  }
  func.func @transform_3(%arg0: i32, %arg1: i32) -> (i32, i32) {
    %c0_i32 = arith.constant 0 : i32
    %c0_i32_0 = arith.constant 0 : i32
    return %arg0, %c0_i32 : i32, i32
  }
  func.func @transform_4(%arg0: i32, %arg1: i32) -> (i32, i32, i32) {
    %c0_i32 = arith.constant 0 : i32
    %c0_i32_0 = arith.constant 0 : i32
    return %arg1, %arg0, %c0_i32 : i32, i32, i32
  }
  func.func @transform_5(%arg0: i32, %arg1: i32) -> (i32, i32) {
    %c0_i32 = arith.constant 0 : i32
    %c0_i32_0 = arith.constant 0 : i32
    return %arg0, %c0_i32 : i32, i32
  }
}

</mosaic_0001>

<llo_original>
// kernel: cor_gru_forward.2
$region0: #{cor_gru_forward.2}
  #allocation0 [shape = 'u32[]', space=smem, size = 0x4, offset = 0x4, fixed_abs, tag = 'smem constant byte address 0x4 - core index']
  #allocation1 [shape = 'u32[72,128]{1,0:T(1,128)}', space=vmem, size = 0x9000, scoped, tag = 'internal scratch']
  %s0 = inlined_call_operand.vmem [shape: f32[8,8,384], index: 0, kind: input, shape index: {}]
  %s1 = inlined_call_operand.vmem [shape: f32[128,384], index: 1, kind: input, shape index: {}]
  %s2 = inlined_call_operand.vmem [shape: f32[1,128], index: 2, kind: input, shape index: {}]
  %s3 = inlined_call_operand.vmem [shape: f32[8,128], index: 3, kind: input, shape index: {}]
  %s4 = inlined_call_operand.vmem [shape: f32[8,8,128], index: 4, kind: output, shape index: {0}]
  %s5 = inlined_call_operand.vmem [shape: f32[8,128], index: 5, kind: output, shape index: {1}]
  %6 = xla_tuple %s4, %s5
  %s7 = sld [smem:[#allocation0]]
  $region38: #{cor_gru_forward.2} parent=0
    _
  %s9 = ssub.s32 1, %s7
  %s10 = scalar_select 0, %s9, %s7
  // Predicated region
  $region2: #{cor_gru_forward.2} parent=0 // pred_check
    _
  $region3: #{cor_gru_forward.2} parent=0 // pred_check_branch
    %12 = sbr.rel (0) target = $region5
  $region4: #{cor_gru_forward.2} parent=0 // pred_region
    _
  $region5: #{cor_gru_forward.2} parent=0 // pred_fallthru
    _
  // Predicated region
  $region6: #{cor_gru_forward.2} parent=0 // pred_check
    _
  $region7: #{cor_gru_forward.2} parent=0 // pred_check_branch
    %14 = sbr.rel (0) target = $region9
  $region8: #{cor_gru_forward.2} parent=0 // pred_region
    _
  $region9: #{cor_gru_forward.2} parent=0 // pred_fallthru
    _
  // Predicated region
  $region10: #{cor_gru_forward.2} parent=0 // pred_check
    _
  $region11: #{cor_gru_forward.2} parent=0 // pred_check_branch
    %16 = sbr.rel (0) target = $region13
  $region12: #{cor_gru_forward.2} parent=0 // pred_region
    _
  $region13: #{cor_gru_forward.2} parent=0 // pred_fallthru
    _
  // Predicated region
  $region14: #{cor_gru_forward.2} parent=0 // pred_check
    _
  $region15: #{cor_gru_forward.2} parent=0 // pred_check_branch
    %18 = sbr.rel (0) target = $region17
  $region16: #{cor_gru_forward.2} parent=0 // pred_region
    _
  $region17: #{cor_gru_forward.2} parent=0 // pred_fallthru
    _
  %p19 = scmp.eq.s32.totalorder 0, 0
  // Predicated region
  $region18: #{cor_gru_forward.2} parent=0 // pred_check
    %p20 = pneg %p19
  $region19: #{cor_gru_forward.2} parent=0 // pred_check_branch
    %22 = sbr.rel (%p20) target = $region21
  $region20: #{cor_gru_forward.2} parent=0 // pred_region
    %v23 = vld [vmem:[%s3] sm:$0xff]
    %24 = vst [vmem:[%s5] sm:$0xff] %v23
  $region21: #{cor_gru_forward.2} parent=0 // pred_fallthru
    _
  %v25 = vld [vmem:[%s1] sm:$0xff]
  %v26 = vld [vmem:[%s1 + $0x8] sm:$0xff]
  %v27 = vld [vmem:[%s1 + $0x10] sm:$0xff]
  %v28 = vld [vmem:[%s1 + $0x18] sm:$0xff]
  %v29 = vld [vmem:[%s1 + $0x20] sm:$0xff]
  %v30 = vld [vmem:[%s1 + $0x28] sm:$0xff]
  %v31 = vld [vmem:[%s1 + $0x30] sm:$0xff]
  %v32 = vld [vmem:[%s1 + $0x38] sm:$0xff]
  %v33 = vld [vmem:[%s1 + $0x40] sm:$0xff]
  %v34 = vld [vmem:[%s1 + $0x48] sm:$0xff]
  %v35 = vld [vmem:[%s1 + $0x50] sm:$0xff]
  %v36 = vld [vmem:[%s1 + $0x58] sm:$0xff]
  %v37 = vld [vmem:[%s1 + $0x60] sm:$0xff]
  %v38 = vld [vmem:[%s1 + $0x68] sm:$0xff]
  %v39 = vld [vmem:[%s1 + $0x70] sm:$0xff]
  %v40 = vld [vmem:[%s1 + $0x78] sm:$0xff]
  %v41 = vld [vmem:[%s1 + $0x80] sm:$0xff]
  %v42 = vld [vmem:[%s1 + $0x88] sm:$0xff]
  %v43 = vld [vmem:[%s1 + $0x90] sm:$0xff]
  %v44 = vld [vmem:[%s1 + $0x98] sm:$0xff]
  %v45 = vld [vmem:[%s1 + $0xa0] sm:$0xff]
  %v46 = vld [vmem:[%s1 + $0xa8] sm:$0xff]
  %v47 = vld [vmem:[%s1 + $0xb0] sm:$0xff]
  %v48 = vld [vmem:[%s1 + $0xb8] sm:$0xff]
  %v49 = vld [vmem:[%s1 + $0xc0] sm:$0xff]
  %v50 = vld [vmem:[%s1 + $0xc8] sm:$0xff]
  %v51 = vld [vmem:[%s1 + $0xd0] sm:$0xff]
  %v52 = vld [vmem:[%s1 + $0xd8] sm:$0xff]
  %v53 = vld [vmem:[%s1 + $0xe0] sm:$0xff]
  %v54 = vld [vmem:[%s1 + $0xe8] sm:$0xff]
  %v55 = vld [vmem:[%s1 + $0xf0] sm:$0xff]
  %v56 = vld [vmem:[%s1 + $0xf8] sm:$0xff]
  %v57 = vld [vmem:[%s1 + $0x100] sm:$0xff]
  %v58 = vld [vmem:[%s1 + $0x108] sm:$0xff]
  %v59 = vld [vmem:[%s1 + $0x110] sm:$0xff]
  %v60 = vld [vmem:[%s1 + $0x118] sm:$0xff]
  %v61 = vld [vmem:[%s1 + $0x120] sm:$0xff]
  %v62 = vld [vmem:[%s1 + $0x128] sm:$0xff]
  %v63 = vld [vmem:[%s1 + $0x130] sm:$0xff]
  %v64 = vld [vmem:[%s1 + $0x138] sm:$0xff]
  %v65 = vld [vmem:[%s1 + $0x140] sm:$0xff]
  %v66 = vld [vmem:[%s1 + $0x148] sm:$0xff]
  %v67 = vld [vmem:[%s1 + $0x150] sm:$0xff]
  %v68 = vld [vmem:[%s1 + $0x158] sm:$0xff]
  %v69 = vld [vmem:[%s1 + $0x160] sm:$0xff]
  %v70 = vld [vmem:[%s1 + $0x168] sm:$0xff]
  %v71 = vld [vmem:[%s1 + $0x170] sm:$0xff]
  %v72 = vld [vmem:[%s1 + $0x178] sm:$0xff]
  %v73 = vld [vmem:[%s2] sm:$0x1]
  %v75 = vperm.slane %v73, 0
  %v77 = vld [vmem:[%s5] sm:$0xff]
  %v78 = vld [vmem:[%s0] sm:$0xff]
  %v79 = vld [vmem:[%s0 + $0x8] sm:$0xff]
  %v80 = vld [vmem:[%s0 + $0x10] sm:$0xff]
  %81 = vmatpush.msra.mxu0 %v70
  %82 = vmatpush.msra.mxu0 %v67
  %83 = vmatpush.msra.mxu0 %v64
  %84 = vmatpush.msra.mxu0 %v61
  %85 = vmatpush.msra.mxu0 %v58
  %86 = vmatpush.msra.mxu0 %v55
  %87 = vmatpush.msra.mxu0 %v52
  %88 = vmatpush.msra.mxu0 %v49
  %89 = vmatpush.msra.mxu0 %v46
  %90 = vmatpush.msra.mxu0 %v43
  %91 = vmatpush.msra.mxu0 %v40
  %92 = vmatpush.msra.mxu0 %v37
  %93 = vmatpush.msra.mxu0 %v34
  %94 = vmatpush.msra.mxu0 %v31
  %95 = vmatpush.msra.mxu0 %v28
  %96 = vmatpush.msra.mxu0 %v25
  %97 = vmatmul.f32.gmra.mxu0 %v77
  %v98 = vpop.f32.mrf.mxu0
  %v99 = vadd.f32 0.0, %v98
  %100 = vdwg.mxu0
  %101 = vmatpush.msra.mxu0 %v71
  %102 = vmatpush.msra.mxu0 %v68
  %103 = vmatpush.msra.mxu0 %v65
  %104 = vmatpush.msra.mxu0 %v62
  %105 = vmatpush.msra.mxu0 %v59
  %106 = vmatpush.msra.mxu0 %v56
  %107 = vmatpush.msra.mxu0 %v53
  %108 = vmatpush.msra.mxu0 %v50
  %109 = vmatpush.msra.mxu0 %v47
  %110 = vmatpush.msra.mxu0 %v44
  %111 = vmatpush.msra.mxu0 %v41
  %112 = vmatpush.msra.mxu0 %v38
  %113 = vmatpush.msra.mxu0 %v35
  %114 = vmatpush.msra.mxu0 %v32
  %115 = vmatpush.msra.mxu0 %v29
  %116 = vmatpush.msra.mxu0 %v26
  %117 = vmatmul.f32.gmra.mxu0 %v77
  %v118 = vpop.f32.mrf.mxu0
  %v119 = vadd.f32 0.0, %v118
  %120 = vdwg.mxu0
  %121 = vmatpush.msra.mxu0 %v72
  %122 = vmatpush.msra.mxu0 %v69
  %123 = vmatpush.msra.mxu0 %v66
  %124 = vmatpush.msra.mxu0 %v63
  %125 = vmatpush.msra.mxu0 %v60
  %126 = vmatpush.msra.mxu0 %v57
  %127 = vmatpush.msra.mxu0 %v54
  %128 = vmatpush.msra.mxu0 %v51
  %129 = vmatpush.msra.mxu0 %v48
  %130 = vmatpush.msra.mxu0 %v45
  %131 = vmatpush.msra.mxu0 %v42
  %132 = vmatpush.msra.mxu0 %v39
  %133 = vmatpush.msra.mxu0 %v36
  %134 = vmatpush.msra.mxu0 %v33
  %135 = vmatpush.msra.mxu0 %v30
  %136 = vmatpush.msra.mxu0 %v27
  %137 = vmatmul.f32.gmra.mxu0 %v77
  %v138 = vpop.f32.mrf.mxu0
  %v139 = vadd.f32 0.0, %v138
  %140 = vdwg.mxu0
  %v141 = vadd.f32 %v78, %v99
  %v142 = vmul.f32 %v141, 0.5
  %v143 = vtanh.pop %v142
  %v144 = vmul.f32 %v143, 0.5
  %v145 = vadd.f32 %v144, 0.5
  %v146 = vadd.f32 %v79, %v119
  %v147 = vmul.f32 %v146, 0.5
  %v148 = vtanh.pop %v147
  %v149 = vmul.f32 %v148, 0.5
  %v150 = vadd.f32 %v149, 0.5
  %v151 = vadd.f32 %v139, %v75
  %v152 = vmul.f32 %v145, %v151
  %v153 = vadd.f32 %v80, %v152
  %v154 = vtanh.pop %v153
  %v155 = vsub.f32 1.0, %v150
  %v156 = vmul.f32 %v155, %v154
  %v157 = vmul.f32 %v150, %v77
  %v158 = vadd.f32 %v156, %v157
  %159 = vst [vmem:[%s4] sm:$0xff] %v158
  %s160 = scalar_lea.vmem %s0, 24
  %v161 = vld [vmem:[%s160] sm:$0xff]
  %v162 = vld [vmem:[%s160 + $0x8] sm:$0xff]
  %v163 = vld [vmem:[%s160 + $0x10] sm:$0xff]
  %164 = vmatpush.msra.mxu0 %v70
  %165 = vmatpush.msra.mxu0 %v67
  %166 = vmatpush.msra.mxu0 %v64
  %167 = vmatpush.msra.mxu0 %v61
  %168 = vmatpush.msra.mxu0 %v58
  %169 = vmatpush.msra.mxu0 %v55
  %170 = vmatpush.msra.mxu0 %v52
  %171 = vmatpush.msra.mxu0 %v49
  %172 = vmatpush.msra.mxu0 %v46
  %173 = vmatpush.msra.mxu0 %v43
  %174 = vmatpush.msra.mxu0 %v40
  %175 = vmatpush.msra.mxu0 %v37
  %176 = vmatpush.msra.mxu0 %v34
  %177 = vmatpush.msra.mxu0 %v31
  %178 = vmatpush.msra.mxu0 %v28
  %179 = vmatpush.msra.mxu0 %v25
  %180 = vmatmul.f32.gmra.mxu0 %v158
  %v181 = vpop.f32.mrf.mxu0
  %v182 = vadd.f32 0.0, %v181
  %183 = vdwg.mxu0
  %184 = vmatpush.msra.mxu0 %v71
  %185 = vmatpush.msra.mxu0 %v68
  %186 = vmatpush.msra.mxu0 %v65
  %187 = vmatpush.msra.mxu0 %v62
  %188 = vmatpush.msra.mxu0 %v59
  %189 = vmatpush.msra.mxu0 %v56
  %190 = vmatpush.msra.mxu0 %v53
  %191 = vmatpush.msra.mxu0 %v50
  %192 = vmatpush.msra.mxu0 %v47
  %193 = vmatpush.msra.mxu0 %v44
  %194 = vmatpush.msra.mxu0 %v41
  %195 = vmatpush.msra.mxu0 %v38
  %196 = vmatpush.msra.mxu0 %v35
  %197 = vmatpush.msra.mxu0 %v32
  %198 = vmatpush.msra.mxu0 %v29
  %199 = vmatpush.msra.mxu0 %v26
  %200 = vmatmul.f32.gmra.mxu0 %v158
  %v201 = vpop.f32.mrf.mxu0
  %v202 = vadd.f32 0.0, %v201
  %203 = vdwg.mxu0
  %204 = vmatpush.msra.mxu0 %v72
  %205 = vmatpush.msra.mxu0 %v69
  %206 = vmatpush.msra.mxu0 %v66
  %207 = vmatpush.msra.mxu0 %v63
  %208 = vmatpush.msra.mxu0 %v60
  %209 = vmatpush.msra.mxu0 %v57
  %210 = vmatpush.msra.mxu0 %v54
  %211 = vmatpush.msra.mxu0 %v51
  %212 = vmatpush.msra.mxu0 %v48
  %213 = vmatpush.msra.mxu0 %v45
  %214 = vmatpush.msra.mxu0 %v42
  %215 = vmatpush.msra.mxu0 %v39
  %216 = vmatpush.msra.mxu0 %v36
  %217 = vmatpush.msra.mxu0 %v33
  %218 = vmatpush.msra.mxu0 %v30
  %219 = vmatpush.msra.mxu0 %v27
  %220 = vmatmul.f32.gmra.mxu0 %v158
  %v221 = vpop.f32.mrf.mxu0
  %v222 = vadd.f32 0.0, %v221
  %223 = vdwg.mxu0
  %v224 = vadd.f32 %v161, %v182
  %v225 = vmul.f32 %v224, 0.5
  %v226 = vtanh.pop %v225
  %v227 = vmul.f32 %v226, 0.5
  %v228 = vadd.f32 %v227, 0.5
  %v229 = vadd.f32 %v162, %v202
  %v230 = vmul.f32 %v229, 0.5
  %v231 = vtanh.pop %v230
  %v232 = vmul.f32 %v231, 0.5
  %v233 = vadd.f32 %v232, 0.5
  %v234 = vadd.f32 %v222, %v75
  %v235 = vmul.f32 %v228, %v234
  %v236 = vadd.f32 %v163, %v235
  %v237 = vtanh.pop %v236
  %v238 = vsub.f32 1.0, %v233
  %v239 = vmul.f32 %v238, %v237
  %v240 = vmul.f32 %v233, %v158
  %v241 = vadd.f32 %v239, %v240
  %s242 = scalar_lea.vmem %s4, 8
  %243 = vst [vmem:[%s242] sm:$0xff] %v241
  %s244 = scalar_lea.vmem %s0, 48
  %v245 = vld [vmem:[%s244] sm:$0xff]
  %v246 = vld [vmem:[%s244 + $0x8] sm:$0xff]
  %v247 = vld [vmem:[%s244 + $0x10] sm:$0xff]
  %248 = vmatpush.msra.mxu0 %v70
  %249 = vmatpush.msra.mxu0 %v67
  %250 = vmatpush.msra.mxu0 %v64
  %251 = vmatpush.msra.mxu0 %v61
  %252 = vmatpush.msra.mxu0 %v58
  %253 = vmatpush.msra.mxu0 %v55
  %254 = vmatpush.msra.mxu0 %v52
  %255 = vmatpush.msra.mxu0 %v49
  %256 = vmatpush.msra.mxu0 %v46
  %257 = vmatpush.msra.mxu0 %v43
  %258 = vmatpush.msra.mxu0 %v40
  %259 = vmatpush.msra.mxu0 %v37
  %260 = vmatpush.msra.mxu0 %v34
  %261 = vmatpush.msra.mxu0 %v31
  %262 = vmatpush.msra.mxu0 %v28
  %263 = vmatpush.msra.mxu0 %v25
  %264 = vmatmul.f32.gmra.mxu0 %v241
  %v265 = vpop.f32.mrf.mxu0
  %v266 = vadd.f32 0.0, %v265
  %267 = vdwg.mxu0
  %268 = vmatpush.msra.mxu0 %v71
  %269 = vmatpush.msra.mxu0 %v68
  %270 = vmatpush.msra.mxu0 %v65
  %271 = vmatpush.msra.mxu0 %v62
  %272 = vmatpush.msra.mxu0 %v59
  %273 = vmatpush.msra.mxu0 %v56
  %274 = vmatpush.msra.mxu0 %v53
  %275 = vmatpush.msra.mxu0 %v50
  %276 = vmatpush.msra.mxu0 %v47
  %277 = vmatpush.msra.mxu0 %v44
  %278 = vmatpush.msra.mxu0 %v41
  %279 = vmatpush.msra.mxu0 %v38
  %280 = vmatpush.msra.mxu0 %v35
  %281 = vmatpush.msra.mxu0 %v32
  %282 = vmatpush.msra.mxu0 %v29
  %283 = vmatpush.msra.mxu0 %v26
  %284 = vmatmul.f32.gmra.mxu0 %v241
  %v285 = vpop.f32.mrf.mxu0
  %v286 = vadd.f32 0.0, %v285
  %287 = vdwg.mxu0
  %288 = vmatpush.msra.mxu0 %v72
  %289 = vmatpush.msra.mxu0 %v69
  %290 = vmatpush.msra.mxu0 %v66
  %291 = vmatpush.msra.mxu0 %v63
  %292 = vmatpush.msra.mxu0 %v60
  %293 = vmatpush.msra.mxu0 %v57
  %294 = vmatpush.msra.mxu0 %v54
  %295 = vmatpush.msra.mxu0 %v51
  %296 = vmatpush.msra.mxu0 %v48
  %297 = vmatpush.msra.mxu0 %v45
  %298 = vmatpush.msra.mxu0 %v42
  %299 = vmatpush.msra.mxu0 %v39
  %300 = vmatpush.msra.mxu0 %v36
  %301 = vmatpush.msra.mxu0 %v33
  %302 = vmatpush.msra.mxu0 %v30
  %303 = vmatpush.msra.mxu0 %v27
  %304 = vmatmul.f32.gmra.mxu0 %v241
  %v305 = vpop.f32.mrf.mxu0
  %v306 = vadd.f32 0.0, %v305
  %307 = vdwg.mxu0
  %v308 = vadd.f32 %v245, %v266
  %v309 = vmul.f32 %v308, 0.5
  %v310 = vtanh.pop %v309
  %v311 = vmul.f32 %v310, 0.5
  %v312 = vadd.f32 %v311, 0.5
  %v313 = vadd.f32 %v246, %v286
  %v314 = vmul.f32 %v313, 0.5
  %v315 = vtanh.pop %v314
  %v316 = vmul.f32 %v315, 0.5
  %v317 = vadd.f32 %v316, 0.5
  %v318 = vadd.f32 %v306, %v75
  %v319 = vmul.f32 %v312, %v318
  %v320 = vadd.f32 %v247, %v319
  %v321 = vtanh.pop %v320
  %v322 = vsub.f32 1.0, %v317
  %v323 = vmul.f32 %v322, %v321
  %v324 = vmul.f32 %v317, %v241
  %v325 = vadd.f32 %v323, %v324
  %s326 = scalar_lea.vmem %s4, 16
  %327 = vst [vmem:[%s326] sm:$0xff] %v325
  %s328 = scalar_lea.vmem %s0, 72
  %v329 = vld [vmem:[%s328] sm:$0xff]
  %v330 = vld [vmem:[%s328 + $0x8] sm:$0xff]
  %v331 = vld [vmem:[%s328 + $0x10] sm:$0xff]
  %332 = vmatpush.msra.mxu0 %v70
  %333 = vmatpush.msra.mxu0 %v67
  %334 = vmatpush.msra.mxu0 %v64
  %335 = vmatpush.msra.mxu0 %v61
  %336 = vmatpush.msra.mxu0 %v58
  %337 = vmatpush.msra.mxu0 %v55
  %338 = vmatpush.msra.mxu0 %v52
  %339 = vmatpush.msra.mxu0 %v49
  %340 = vmatpush.msra.mxu0 %v46
  %341 = vmatpush.msra.mxu0 %v43
  %342 = vmatpush.msra.mxu0 %v40
  %343 = vmatpush.msra.mxu0 %v37
  %344 = vmatpush.msra.mxu0 %v34
  %345 = vmatpush.msra.mxu0 %v31
  %346 = vmatpush.msra.mxu0 %v28
  %347 = vmatpush.msra.mxu0 %v25
  %348 = vmatmul.f32.gmra.mxu0 %v325
  %v349 = vpop.f32.mrf.mxu0
  %v350 = vadd.f32 0.0, %v349
  %351 = vdwg.mxu0
  %352 = vmatpush.msra.mxu0 %v71
  %353 = vmatpush.msra.mxu0 %v68
  %354 = vmatpush.msra.mxu0 %v65
  %355 = vmatpush.msra.mxu0 %v62
  %356 = vmatpush.msra.mxu0 %v59
  %357 = vmatpush.msra.mxu0 %v56
  %358 = vmatpush.msra.mxu0 %v53
  %359 = vmatpush.msra.mxu0 %v50
  %360 = vmatpush.msra.mxu0 %v47
  %361 = vmatpush.msra.mxu0 %v44
  %362 = vmatpush.msra.mxu0 %v41
  %363 = vmatpush.msra.mxu0 %v38
  %364 = vmatpush.msra.mxu0 %v35
  %365 = vmatpush.msra.mxu0 %v32
  %366 = vmatpush.msra.mxu0 %v29
  %367 = vmatpush.msra.mxu0 %v26
  %368 = vmatmul.f32.gmra.mxu0 %v325
  %v369 = vpop.f32.mrf.mxu0
  %v370 = vadd.f32 0.0, %v369
  %371 = vdwg.mxu0
  %372 = vmatpush.msra.mxu0 %v72
  %373 = vmatpush.msra.mxu0 %v69
  %374 = vmatpush.msra.mxu0 %v66
  %375 = vmatpush.msra.mxu0 %v63
  %376 = vmatpush.msra.mxu0 %v60
  %377 = vmatpush.msra.mxu0 %v57
  %378 = vmatpush.msra.mxu0 %v54
  %379 = vmatpush.msra.mxu0 %v51
  %380 = vmatpush.msra.mxu0 %v48
  %381 = vmatpush.msra.mxu0 %v45
  %382 = vmatpush.msra.mxu0 %v42
  %383 = vmatpush.msra.mxu0 %v39
  %384 = vmatpush.msra.mxu0 %v36
  %385 = vmatpush.msra.mxu0 %v33
  %386 = vmatpush.msra.mxu0 %v30
  %387 = vmatpush.msra.mxu0 %v27
  %388 = vmatmul.f32.gmra.mxu0 %v325
  %v389 = vpop.f32.mrf.mxu0
  %v390 = vadd.f32 0.0, %v389
  %391 = vdwg.mxu0
  %v392 = vadd.f32 %v329, %v350
  %v393 = vmul.f32 %v392, 0.5
  %v394 = vtanh.pop %v393
  %v395 = vmul.f32 %v394, 0.5
  %v396 = vadd.f32 %v395, 0.5
  %v397 = vadd.f32 %v330, %v370
  %v398 = vmul.f32 %v397, 0.5
  %v399 = vtanh.pop %v398
  %v400 = vmul.f32 %v399, 0.5
  %v401 = vadd.f32 %v400, 0.5
  %v402 = vadd.f32 %v390, %v75
  %v403 = vmul.f32 %v396, %v402
  %v404 = vadd.f32 %v331, %v403
  %v405 = vtanh.pop %v404
  %v406 = vsub.f32 1.0, %v401
  %v407 = vmul.f32 %v406, %v405
  %v408 = vmul.f32 %v401, %v325
  %v409 = vadd.f32 %v407, %v408
  %s410 = scalar_lea.vmem %s4, 24
  %411 = vst [vmem:[%s410] sm:$0xff] %v409
  %s412 = scalar_lea.vmem %s0, 96
  %v413 = vld [vmem:[%s412] sm:$0xff]
  %v414 = vld [vmem:[%s412 + $0x8] sm:$0xff]
  %v415 = vld [vmem:[%s412 + $0x10] sm:$0xff]
  %416 = vmatpush.msra.mxu0 %v70
  %417 = vmatpush.msra.mxu0 %v67
  %418 = vmatpush.msra.mxu0 %v64
  %419 = vmatpush.msra.mxu0 %v61
  %420 = vmatpush.msra.mxu0 %v58
  %421 = vmatpush.msra.mxu0 %v55
  %422 = vmatpush.msra.mxu0 %v52
  %423 = vmatpush.msra.mxu0 %v49
  %424 = vmatpush.msra.mxu0 %v46
  %425 = vmatpush.msra.mxu0 %v43
  %426 = vmatpush.msra.mxu0 %v40
  %427 = vmatpush.msra.mxu0 %v37
  %428 = vmatpush.msra.mxu0 %v34
  %429 = vmatpush.msra.mxu0 %v31
  %430 = vmatpush.msra.mxu0 %v28
  %431 = vmatpush.msra.mxu0 %v25
  %432 = vmatmul.f32.gmra.mxu0 %v409
  %v433 = vpop.f32.mrf.mxu0
  %v434 = vadd.f32 0.0, %v433
  %435 = vdwg.mxu0
  %436 = vmatpush.msra.mxu0 %v71
  %437 = vmatpush.msra.mxu0 %v68
  %438 = vmatpush.msra.mxu0 %v65
  %439 = vmatpush.msra.mxu0 %v62
  %440 = vmatpush.msra.mxu0 %v59
  %441 = vmatpush.msra.mxu0 %v56
  %442 = vmatpush.msra.mxu0 %v53
  %443 = vmatpush.msra.mxu0 %v50
  %444 = vmatpush.msra.mxu0 %v47
  %445 = vmatpush.msra.mxu0 %v44
  %446 = vmatpush.msra.mxu0 %v41
  %447 = vmatpush.msra.mxu0 %v38
  %448 = vmatpush.msra.mxu0 %v35
  %449 = vmatpush.msra.mxu0 %v32
  %450 = vmatpush.msra.mxu0 %v29
  %451 = vmatpush.msra.mxu0 %v26
  %452 = vmatmul.f32.gmra.mxu0 %v409
  %v453 = vpop.f32.mrf.mxu0
  %v454 = vadd.f32 0.0, %v453
  %455 = vdwg.mxu0
  %456 = vmatpush.msra.mxu0 %v72
  %457 = vmatpush.msra.mxu0 %v69
  %458 = vmatpush.msra.mxu0 %v66
  %459 = vmatpush.msra.mxu0 %v63
  %460 = vmatpush.msra.mxu0 %v60
  %461 = vmatpush.msra.mxu0 %v57
  %462 = vmatpush.msra.mxu0 %v54
  %463 = vmatpush.msra.mxu0 %v51
  %464 = vmatpush.msra.mxu0 %v48
  %465 = vmatpush.msra.mxu0 %v45
  %466 = vmatpush.msra.mxu0 %v42
  %467 = vmatpush.msra.mxu0 %v39
  %468 = vmatpush.msra.mxu0 %v36
  %469 = vmatpush.msra.mxu0 %v33
  %470 = vmatpush.msra.mxu0 %v30
  %471 = vmatpush.msra.mxu0 %v27
  %472 = vmatmul.f32.gmra.mxu0 %v409
  %v473 = vpop.f32.mrf.mxu0
  %v474 = vadd.f32 0.0, %v473
  %475 = vdwg.mxu0
  %v476 = vadd.f32 %v413, %v434
  %v477 = vmul.f32 %v476, 0.5
  %v478 = vtanh.pop %v477
  %v479 = vmul.f32 %v478, 0.5
  %v480 = vadd.f32 %v479, 0.5
  %v481 = vadd.f32 %v414, %v454
  %v482 = vmul.f32 %v481, 0.5
  %v483 = vtanh.pop %v482
  %v484 = vmul.f32 %v483, 0.5
  %v485 = vadd.f32 %v484, 0.5
  %v486 = vadd.f32 %v474, %v75
  %v487 = vmul.f32 %v480, %v486
  %v488 = vadd.f32 %v415, %v487
  %v489 = vtanh.pop %v488
  %v490 = vsub.f32 1.0, %v485
  %v491 = vmul.f32 %v490, %v489
  %v492 = vmul.f32 %v485, %v409
  %v493 = vadd.f32 %v491, %v492
  %s494 = scalar_lea.vmem %s4, 32
  %495 = vst [vmem:[%s494] sm:$0xff] %v493
  %s496 = scalar_lea.vmem %s0, 120
  %v497 = vld [vmem:[%s496] sm:$0xff]
  %v498 = vld [vmem:[%s496 + $0x8] sm:$0xff]
  %v499 = vld [vmem:[%s496 + $0x10] sm:$0xff]
  %500 = vmatpush.msra.mxu0 %v70
  %501 = vmatpush.msra.mxu0 %v67
  %502 = vmatpush.msra.mxu0 %v64
  %503 = vmatpush.msra.mxu0 %v61
  %504 = vmatpush.msra.mxu0 %v58
  %505 = vmatpush.msra.mxu0 %v55
  %506 = vmatpush.msra.mxu0 %v52
  %507 = vmatpush.msra.mxu0 %v49
  %508 = vmatpush.msra.mxu0 %v46
  %509 = vmatpush.msra.mxu0 %v43
  %510 = vmatpush.msra.mxu0 %v40
  %511 = vmatpush.msra.mxu0 %v37
  %512 = vmatpush.msra.mxu0 %v34
  %513 = vmatpush.msra.mxu0 %v31
  %514 = vmatpush.msra.mxu0 %v28
  %515 = vmatpush.msra.mxu0 %v25
  %516 = vmatmul.f32.gmra.mxu0 %v493
  %v517 = vpop.f32.mrf.mxu0
  %v518 = vadd.f32 0.0, %v517
  %519 = vdwg.mxu0
  %520 = vmatpush.msra.mxu0 %v71
  %521 = vmatpush.msra.mxu0 %v68
  %522 = vmatpush.msra.mxu0 %v65
  %523 = vmatpush.msra.mxu0 %v62
  %524 = vmatpush.msra.mxu0 %v59
  %525 = vmatpush.msra.mxu0 %v56
  %526 = vmatpush.msra.mxu0 %v53
  %527 = vmatpush.msra.mxu0 %v50
  %528 = vmatpush.msra.mxu0 %v47
  %529 = vmatpush.msra.mxu0 %v44
  %530 = vmatpush.msra.mxu0 %v41
  %531 = vmatpush.msra.mxu0 %v38
  %532 = vmatpush.msra.mxu0 %v35
  %533 = vmatpush.msra.mxu0 %v32
  %534 = vmatpush.msra.mxu0 %v29
  %535 = vmatpush.msra.mxu0 %v26
  %536 = vmatmul.f32.gmra.mxu0 %v493
  %v537 = vpop.f32.mrf.mxu0
  %v538 = vadd.f32 0.0, %v537
  %539 = vdwg.mxu0
  %540 = vmatpush.msra.mxu0 %v72
  %541 = vmatpush.msra.mxu0 %v69
  %542 = vmatpush.msra.mxu0 %v66
  %543 = vmatpush.msra.mxu0 %v63
  %544 = vmatpush.msra.mxu0 %v60
  %545 = vmatpush.msra.mxu0 %v57
  %546 = vmatpush.msra.mxu0 %v54
  %547 = vmatpush.msra.mxu0 %v51
  %548 = vmatpush.msra.mxu0 %v48
  %549 = vmatpush.msra.mxu0 %v45
  %550 = vmatpush.msra.mxu0 %v42
  %551 = vmatpush.msra.mxu0 %v39
  %552 = vmatpush.msra.mxu0 %v36
  %553 = vmatpush.msra.mxu0 %v33
  %554 = vmatpush.msra.mxu0 %v30
  %555 = vmatpush.msra.mxu0 %v27
  %556 = vmatmul.f32.gmra.mxu0 %v493
  %v557 = vpop.f32.mrf.mxu0
  %v558 = vadd.f32 0.0, %v557
  %559 = vdwg.mxu0
  %v560 = vadd.f32 %v497, %v518
  %v561 = vmul.f32 %v560, 0.5
  %v562 = vtanh.pop %v561
  %v563 = vmul.f32 %v562, 0.5
  %v564 = vadd.f32 %v563, 0.5
  %v565 = vadd.f32 %v498, %v538
  %v566 = vmul.f32 %v565, 0.5
  %v567 = vtanh.pop %v566
  %v568 = vmul.f32 %v567, 0.5
  %v569 = vadd.f32 %v568, 0.5
  %v570 = vadd.f32 %v558, %v75
  %v571 = vmul.f32 %v564, %v570
  %v572 = vadd.f32 %v499, %v571
  %v573 = vtanh.pop %v572
  %v574 = vsub.f32 1.0, %v569
  %v575 = vmul.f32 %v574, %v573
  %v576 = vmul.f32 %v569, %v493
  %v577 = vadd.f32 %v575, %v576
  %s578 = scalar_lea.vmem %s4, 40
  %579 = vst [vmem:[%s578] sm:$0xff] %v577
  %s580 = scalar_lea.vmem %s0, 144
  %v581 = vld [vmem:[%s580] sm:$0xff]
  %v582 = vld [vmem:[%s580 + $0x8] sm:$0xff]
  %v583 = vld [vmem:[%s580 + $0x10] sm:$0xff]
  %584 = vmatpush.msra.mxu0 %v70
  %585 = vmatpush.msra.mxu0 %v67
  %586 = vmatpush.msra.mxu0 %v64
  %587 = vmatpush.msra.mxu0 %v61
  %588 = vmatpush.msra.mxu0 %v58
  %589 = vmatpush.msra.mxu0 %v55
  %590 = vmatpush.msra.mxu0 %v52
  %591 = vmatpush.msra.mxu0 %v49
  %592 = vmatpush.msra.mxu0 %v46
  %593 = vmatpush.msra.mxu0 %v43
  %594 = vmatpush.msra.mxu0 %v40
  %595 = vmatpush.msra.mxu0 %v37
  %596 = vmatpush.msra.mxu0 %v34
  %597 = vmatpush.msra.mxu0 %v31
  %598 = vmatpush.msra.mxu0 %v28
  %599 = vmatpush.msra.mxu0 %v25
  %600 = vmatmul.f32.gmra.mxu0 %v577
  %v601 = vpop.f32.mrf.mxu0
  %v602 = vadd.f32 0.0, %v601
  %603 = vdwg.mxu0
  %604 = vmatpush.msra.mxu0 %v71
  %605 = vmatpush.msra.mxu0 %v68
  %606 = vmatpush.msra.mxu0 %v65
  %607 = vmatpush.msra.mxu0 %v62
  %608 = vmatpush.msra.mxu0 %v59
  %609 = vmatpush.msra.mxu0 %v56
  %610 = vmatpush.msra.mxu0 %v53
  %611 = vmatpush.msra.mxu0 %v50
  %612 = vmatpush.msra.mxu0 %v47
  %613 = vmatpush.msra.mxu0 %v44
  %614 = vmatpush.msra.mxu0 %v41
  %615 = vmatpush.msra.mxu0 %v38
  %616 = vmatpush.msra.mxu0 %v35
  %617 = vmatpush.msra.mxu0 %v32
  %618 = vmatpush.msra.mxu0 %v29
  %619 = vmatpush.msra.mxu0 %v26
  %620 = vmatmul.f32.gmra.mxu0 %v577
  %v621 = vpop.f32.mrf.mxu0
  %v622 = vadd.f32 0.0, %v621
  %623 = vdwg.mxu0
  %624 = vmatpush.msra.mxu0 %v72
  %625 = vmatpush.msra.mxu0 %v69
  %626 = vmatpush.msra.mxu0 %v66
  %627 = vmatpush.msra.mxu0 %v63
  %628 = vmatpush.msra.mxu0 %v60
  %629 = vmatpush.msra.mxu0 %v57
  %630 = vmatpush.msra.mxu0 %v54
  %631 = vmatpush.msra.mxu0 %v51
  %632 = vmatpush.msra.mxu0 %v48
  %633 = vmatpush.msra.mxu0 %v45
  %634 = vmatpush.msra.mxu0 %v42
  %635 = vmatpush.msra.mxu0 %v39
  %636 = vmatpush.msra.mxu0 %v36
  %637 = vmatpush.msra.mxu0 %v33
  %638 = vmatpush.msra.mxu0 %v30
  %639 = vmatpush.msra.mxu0 %v27
  %640 = vmatmul.f32.gmra.mxu0 %v577
  %v641 = vpop.f32.mrf.mxu0
  %v642 = vadd.f32 0.0, %v641
  %643 = vdwg.mxu0
  %v644 = vadd.f32 %v581, %v602
  %v645 = vmul.f32 %v644, 0.5
  %v646 = vtanh.pop %v645
  %v647 = vmul.f32 %v646, 0.5
  %v648 = vadd.f32 %v647, 0.5
  %v649 = vadd.f32 %v582, %v622
  %v650 = vmul.f32 %v649, 0.5
  %v651 = vtanh.pop %v650
  %v652 = vmul.f32 %v651, 0.5
  %v653 = vadd.f32 %v652, 0.5
  %v654 = vadd.f32 %v642, %v75
  %v655 = vmul.f32 %v648, %v654
  %v656 = vadd.f32 %v583, %v655
  %v657 = vtanh.pop %v656
  %v658 = vsub.f32 1.0, %v653
  %v659 = vmul.f32 %v658, %v657
  %v660 = vmul.f32 %v653, %v577
  %v661 = vadd.f32 %v659, %v660
  %s662 = scalar_lea.vmem %s4, 48
  %663 = vst [vmem:[%s662] sm:$0xff] %v661
  %s664 = scalar_lea.vmem %s0, 168
  %v665 = vld [vmem:[%s664] sm:$0xff]
  %v666 = vld [vmem:[%s664 + $0x8] sm:$0xff]
  %v667 = vld [vmem:[%s664 + $0x10] sm:$0xff]
  %668 = vmatpush.msra.mxu0 %v70
  %669 = vmatpush.msra.mxu0 %v67
  %670 = vmatpush.msra.mxu0 %v64
  %671 = vmatpush.msra.mxu0 %v61
  %672 = vmatpush.msra.mxu0 %v58
  %673 = vmatpush.msra.mxu0 %v55
  %674 = vmatpush.msra.mxu0 %v52
  %675 = vmatpush.msra.mxu0 %v49
  %676 = vmatpush.msra.mxu0 %v46
  %677 = vmatpush.msra.mxu0 %v43
  %678 = vmatpush.msra.mxu0 %v40
  %679 = vmatpush.msra.mxu0 %v37
  %680 = vmatpush.msra.mxu0 %v34
  %681 = vmatpush.msra.mxu0 %v31
  %682 = vmatpush.msra.mxu0 %v28
  %683 = vmatpush.msra.mxu0 %v25
  %684 = vmatmul.f32.gmra.mxu0 %v661
  %v685 = vpop.f32.mrf.mxu0
  %v686 = vadd.f32 0.0, %v685
  %687 = vdwg.mxu0
  %688 = vmatpush.msra.mxu0 %v71
  %689 = vmatpush.msra.mxu0 %v68
  %690 = vmatpush.msra.mxu0 %v65
  %691 = vmatpush.msra.mxu0 %v62
  %692 = vmatpush.msra.mxu0 %v59
  %693 = vmatpush.msra.mxu0 %v56
  %694 = vmatpush.msra.mxu0 %v53
  %695 = vmatpush.msra.mxu0 %v50
  %696 = vmatpush.msra.mxu0 %v47
  %697 = vmatpush.msra.mxu0 %v44
  %698 = vmatpush.msra.mxu0 %v41
  %699 = vmatpush.msra.mxu0 %v38
  %700 = vmatpush.msra.mxu0 %v35
  %701 = vmatpush.msra.mxu0 %v32
  %702 = vmatpush.msra.mxu0 %v29
  %703 = vmatpush.msra.mxu0 %v26
  %704 = vmatmul.f32.gmra.mxu0 %v661
  %v705 = vpop.f32.mrf.mxu0
  %v706 = vadd.f32 0.0, %v705
  %707 = vdwg.mxu0
  %708 = vmatpush.msra.mxu0 %v72
  %709 = vmatpush.msra.mxu0 %v69
  %710 = vmatpush.msra.mxu0 %v66
  %711 = vmatpush.msra.mxu0 %v63
  %712 = vmatpush.msra.mxu0 %v60
  %713 = vmatpush.msra.mxu0 %v57
  %714 = vmatpush.msra.mxu0 %v54
  %715 = vmatpush.msra.mxu0 %v51
  %716 = vmatpush.msra.mxu0 %v48
  %717 = vmatpush.msra.mxu0 %v45
  %718 = vmatpush.msra.mxu0 %v42
  %719 = vmatpush.msra.mxu0 %v39
  %720 = vmatpush.msra.mxu0 %v36
  %721 = vmatpush.msra.mxu0 %v33
  %722 = vmatpush.msra.mxu0 %v30
  %723 = vmatpush.msra.mxu0 %v27
  %724 = vmatmul.f32.gmra.mxu0 %v661
  %v725 = vpop.f32.mrf.mxu0
  %v726 = vadd.f32 0.0, %v725
  %727 = vdwg.mxu0
  %v728 = vadd.f32 %v665, %v686
  %v729 = vmul.f32 %v728, 0.5
  %v730 = vtanh.pop %v729
  %v731 = vmul.f32 %v730, 0.5
  %v732 = vadd.f32 %v731, 0.5
  %v733 = vadd.f32 %v666, %v706
  %v734 = vmul.f32 %v733, 0.5
  %v735 = vtanh.pop %v734
  %v736 = vmul.f32 %v735, 0.5
  %v737 = vadd.f32 %v736, 0.5
  %v738 = vadd.f32 %v726, %v75
  %v739 = vmul.f32 %v732, %v738
  %v740 = vadd.f32 %v667, %v739
  %v741 = vtanh.pop %v740
  %v742 = vsub.f32 1.0, %v737
  %v743 = vmul.f32 %v742, %v741
  %v744 = vmul.f32 %v737, %v661
  %v745 = vadd.f32 %v743, %v744
  %s746 = scalar_lea.vmem %s4, 56
  %747 = vst [vmem:[%s746] sm:$0xff] %v745
  %748 = vst [vmem:[%s5] sm:$0xff] %v745
  // Predicated region
  $region22: #{cor_gru_forward.2} parent=0 // pred_check
    _
  $region23: #{cor_gru_forward.2} parent=0 // pred_check_branch
    %750 = sbr.rel (0) target = $region25
  $region24: #{cor_gru_forward.2} parent=0 // pred_region
    _
  $region25: #{cor_gru_forward.2} parent=0 // pred_fallthru
    _
  // Predicated region
  $region26: #{cor_gru_forward.2} parent=0 // pred_check
    _
  $region27: #{cor_gru_forward.2} parent=0 // pred_check_branch
    %752 = sbr.rel (0) target = $region29
  $region28: #{cor_gru_forward.2} parent=0 // pred_region
    _
  $region29: #{cor_gru_forward.2} parent=0 // pred_fallthru
    _
  // Predicated region
  $region30: #{cor_gru_forward.2} parent=0 // pred_check
    _
  $region31: #{cor_gru_forward.2} parent=0 // pred_check_branch
    %754 = sbr.rel (0) target = $region33
  $region32: #{cor_gru_forward.2} parent=0 // pred_region
    _
  $region33: #{cor_gru_forward.2} parent=0 // pred_fallthru
    _
  // Predicated region
  $region34: #{cor_gru_forward.2} parent=0 // pred_check
    _
  $region35: #{cor_gru_forward.2} parent=0 // pred_check_branch
    %756 = sbr.rel (0) target = $region37
  $region36: #{cor_gru_forward.2} parent=0 // pred_region
    _
  $region37: #{cor_gru_forward.2} parent=0 // pred_fallthru
    _

</llo_original>
